<compile_context>
chip_gen: v7x
topology: tpu7x:2x2x1
jax: 0.10.0
libtpu: 0.0.40
codegen_flags: <defaults>
</compile_context>

<pallas_src>
import math
import jax
import jax.numpy as jnp
from jax import lax
from jax.experimental import pallas as pl
from jax.experimental.pallas import tpu as pltpu


# ----------------------------------------------------------------------------
# Pallas kernel: one GRU direction per grid step (grid=(2,), "parallel").
# The time recurrence runs inside the body; hidden state is a fori_loop carry.
# ----------------------------------------------------------------------------
def bigru_kernel(gi_ref, mask_ref, wh_ref, bhn_ref, out_ref, hT_ref):
    """Per-direction masked GRU.

    gi_ref  : (T, B, 3H) precomputed input gates x@W_ih^T + b_ih (+ b_hh_r/z folded)
    mask_ref: (T, B, 1)  validity mask (t < length)
    wh_ref  : (H, 3H)    fused recurrent weights, columns [r | z | n]
    bhn_ref : (1, 3H)    recurrent bias, zero except the n-gate slot
    out_ref : (T, B, H)  per-step outputs (0 on padded steps)
    hT_ref  : (B, H)     final hidden state
    """
    d = pl.program_id(0)                  # 0 = forward, 1 = backward
    T, B, _ = gi_ref.shape
    H = hT_ref.shape[-1]

    wh = wh_ref[...]                      # loaded once, reused every step
    bhn = bhn_ref[...]

    def step(t, h_prev):
        # forward: s = t ; backward: s = T - 1 - t (pure scalar int arithmetic)
        s = t + d * (T - 1 - 2 * t)
        gi = gi_ref[s]                                            # (B, 3H)
        # Single fused recurrent matmul per timestep.
        gh = jnp.dot(h_prev, wh, preferred_element_type=jnp.float32) + bhn
        r = jax.nn.sigmoid(gi[:, 0:H] + gh[:, 0:H])
        z = jax.nn.sigmoid(gi[:, H:2 * H] + gh[:, H:2 * H])
        n = jnp.tanh(gi[:, 2 * H:3 * H] + r * gh[:, 2 * H:3 * H])
        h_new = (1.0 - z) * n + z * h_prev
        valid = mask_ref[s] > 0.5                                 # (B, 1)
        h_next = jnp.where(valid, h_new, h_prev)                  # pads keep h
        out_ref[s] = jnp.where(valid, h_new, 0.0)                 # pads -> 0
        return h_next

    h_final = lax.fori_loop(0, T, step, jnp.zeros((B, H), jnp.float32),
                            unroll=True)
    hT_ref[...] = h_final                 # written once, after the loop


def run_bigru(gi, mask, wh, bhn, hidden_size):
    """gi: (2,T,B,3H), mask: (T,B,1), wh: (2,H,3H), bhn: (2,1,3H)."""
    D, T, B, G = gi.shape
    H = hidden_size
    return pl.pallas_call(
        bigru_kernel,
        grid=(D,),
        in_specs=[
            pl.BlockSpec((None, T, B, G), lambda d: (d, 0, 0, 0)),   # gi
            pl.BlockSpec((T, B, 1), lambda d: (0, 0, 0)),            # mask (shared)
            pl.BlockSpec((None, H, G), lambda d: (d, 0, 0)),         # W_hh fused
            pl.BlockSpec((None, 1, G), lambda d: (d, 0, 0)),         # b_hh_n
        ],
        out_specs=(
            pl.BlockSpec((None, T, B, H), lambda d: (d, 0, 0, 0)),   # outputs
            pl.BlockSpec((None, B, H), lambda d: (d, 0, 0)),         # final hidden
        ),
        out_shape=(jax.ShapeDtypeStruct((D, T, B, H), jnp.float32),
                   jax.ShapeDtypeStruct((D, B, H), jnp.float32)),
        compiler_params=pltpu.CompilerParams(
            dimension_semantics=("parallel",)),
    )(gi, mask, wh, bhn)


# ----------------------------------------------------------------------------
# Parameter init (deterministic, mirrors nn.Embedding / nn.GRU shapes)
# ----------------------------------------------------------------------------
def init_params(key, input_size, hidden_size):
    H = hidden_size
    k = 1.0 / math.sqrt(H)
    keys = jax.random.split(key, 9)
    params = {"embedding": jax.random.normal(keys[0], (input_size, H), jnp.float32)}
    names = ["w_ih_fw", "w_hh_fw", "b_ih_fw", "b_hh_fw",
             "w_ih_bw", "w_hh_bw", "b_ih_bw", "b_hh_bw"]
    shapes = [(3 * H, H), (3 * H, H), (3 * H,), (3 * H,)] * 2
    for name, shape, kk in zip(names, shapes, keys[1:]):
        params[name] = jax.random.uniform(kk, shape, jnp.float32, -k, k)
    return params


def _pack_direction(w_ih, w_hh, b_ih, b_hh, H):
    """PyTorch (3H,H)/(3H,) [gate order r,z,n] -> fused kernel form."""
    wi = w_ih.T          # (H, 3H): x@wi[:, gH:(g+1)H] == x @ W_ig^T
    wh = w_hh.T          # (H, 3H)
    # Fold b_hh_r and b_hh_z into the precomputed input-gate bias; b_hh_n must
    # stay on the recurrent side because of the r * (h@W_hn^T + b_hn) term.
    b_in = jnp.concatenate([b_ih[:2 * H] + b_hh[:2 * H], b_ih[2 * H:]])        # (3H,)
    b_hn = jnp.concatenate([jnp.zeros((2 * H,), jnp.float32), b_hh[2 * H:]])   # (3H,)
    return wi, wh, b_in, b_hn.reshape(1, 3 * H)


# ----------------------------------------------------------------------------
# EncoderRNN forward (packed-sequence semantics via masking)
# ----------------------------------------------------------------------------
def encoder_forward(params, input_seqs, input_lengths, hidden_size):
    # input_seqs: (T, B) int32 token ids; input_lengths: (B,) int32
    T, B = input_seqs.shape
    H = hidden_size

    embedded = params["embedding"][input_seqs]                      # (T, B, H)
    t_idx = jnp.arange(T, dtype=jnp.int32)
    mask = (t_idx[:, None] < input_lengths[None, :]).astype(jnp.float32)[:, :, None]

    packs = [_pack_direction(params[f"w_ih_{dn}"], params[f"w_hh_{dn}"],
                             params[f"b_ih_{dn}"], params[f"b_hh_{dn}"], H)
             for dn in ("fw", "bw")]
    wi = jnp.stack([p[0] for p in packs])     # (2, H, 3H)
    wh = jnp.stack([p[1] for p in packs])     # (2, H, 3H)
    b_in = jnp.stack([p[2] for p in packs])   # (2, 3H)
    b_hn = jnp.stack([p[3] for p in packs])   # (2, 1, 3H)

    # Hoisted, time-independent input projection: one large batched matmul
    # (M = T*B) instead of 6 tiny per-step matmuls inside the recurrence.
    # TODO(synk): at production sizes cast embedded/wi/wh to bf16 (f32 accumulate)
    # on v6e/v7x; kept f32 here for a tight correctness check vs the reference.
    gi = jnp.einsum("tbh,dhg->dtbg", embedded, wi) + b_in[:, None, None, :]  # (2,T,B,3H)

    out2, hidden = run_bigru(gi, mask, wh, b_hn, H)
    outputs = out2[0] + out2[1]               # (T, B, H): fw + bw, as in the module
    return outputs, hidden                    # hidden: (2, B, H) = [h_fw, h_bw]


# ----------------------------------------------------------------------------
# Pure-JAX reference (lax.scan, gather-based reversal) for correctness check
# ----------------------------------------------------------------------------
def _gru_ref_direction(x_seq, mask, h0, w_ih, w_hh, b_ih, b_hh, H):
    def step(h_prev, inp):
        x_t, m_t = inp
        gi = x_t @ w_ih.T + b_ih
        gh = h_prev @ w_hh.T + b_hh
        r = jax.nn.sigmoid(gi[:, :H] + gh[:, :H])
        z = jax.nn.sigmoid(gi[:, H:2 * H] + gh[:, H:2 * H])
        n = jnp.tanh(gi[:, 2 * H:] + r * gh[:, 2 * H:])
        h_new = (1.0 - z) * n + z * h_prev
        valid = m_t > 0.5
        h_next = jnp.where(valid, h_new, h_prev)
        return h_next, jnp.where(valid, h_new, 0.0)
    h_final, outs = lax.scan(step, h0, (x_seq, mask))
    return outs, h_final


def encoder_forward_ref(params, input_seqs, input_lengths, hidden_size):
    T, B = input_seqs.shape
    H = hidden_size
    embedded = params["embedding"][input_seqs]
    t_idx = jnp.arange(T, dtype=jnp.int32)
    mask = (t_idx[:, None] < input_lengths[None, :]).astype(jnp.float32)[:, :, None]
    h0 = jnp.zeros((B, H), jnp.float32)
    out_fw, h_fw = _gru_ref_direction(embedded, mask, h0,
                                      params["w_ih_fw"], params["w_hh_fw"],
                                      params["b_ih_fw"], params["b_hh_fw"], H)
    rev_idx = jnp.clip(input_lengths[None, :] - 1 - t_idx[:, None], 0, T - 1)
    emb_rev = jnp.take_along_axis(embedded, rev_idx[:, :, None], axis=0)
    out_bw_rev, h_bw = _gru_ref_direction(emb_rev, mask, h0,
                                          params["w_ih_bw"], params["w_hh_bw"],
                                          params["b_ih_bw"], params["b_hh_bw"], H)
    out_bw = jnp.take_along_axis(out_bw_rev, rev_idx[:, :, None], axis=0) * mask
    return out_fw + out_bw, jnp.stack([h_fw, h_bw], axis=0)


if __name__ == "__main__":
    INPUT_SIZE = 20     # vocab
    HIDDEN = 32
    T, B = 8, 2

    key = jax.random.PRNGKey(0)
    k_param, k_tok = jax.random.split(key)
    params = init_params(k_param, INPUT_SIZE, HIDDEN)

    input_seqs = jax.random.randint(k_tok, (T, B), 0, INPUT_SIZE, dtype=jnp.int32)
    input_lengths = jnp.array([T, 5], dtype=jnp.int32)  # max length == T (pad_packed)

    outputs, hidden = encoder_forward(params, input_seqs, input_lengths, HIDDEN)
    outputs = jax.block_until_ready(outputs)
    hidden = jax.block_until_ready(hidden)

    ref_out, ref_hid = encoder_forward_ref(params, input_seqs, input_lengths, HIDDEN)
    assert outputs.shape == (T, B, HIDDEN)
    assert hidden.shape == (2, B, HIDDEN)
    assert jnp.allclose(outputs, ref_out, atol=1e-4, rtol=1e-4), \
        float(jnp.max(jnp.abs(outputs - ref_out)))
    assert jnp.allclose(hidden, ref_hid, atol=1e-4, rtol=1e-4), \
        float(jnp.max(jnp.abs(hidden - ref_hid)))

    # TODO(synk): GRU dropout arg is a no-op for n_layers=1 in PyTorch, so it is omitted.
    print("KERNEL_OK")
</pallas_src>

<mosaic_0001>
module attributes {stable_mosaic.version = 11 : i64} {
  func.func @bigru_kernel(%arg0: i32, %arg1: memref<1x8x2x96xf32, #tpu.memory_space<vmem>>, %arg2: memref<8x2x1xf32, #tpu.memory_space<vmem>>, %arg3: memref<1x32x96xf32, #tpu.memory_space<vmem>>, %arg4: memref<1x1x96xf32, #tpu.memory_space<vmem>>, %arg5: memref<1x8x2x32xf32, #tpu.memory_space<vmem>>, %arg6: memref<1x2x32xf32, #tpu.memory_space<vmem>>) attributes {dimension_semantics = [#tpu.dimension_semantics<parallel>], iteration_bounds = array<i64: 2>, scalar_prefetch = 0 : i64, scratch_operands = 0 : i64, tpu.core_type = #tpu.core_type<tc>, window_params = [{transform_indices = @transform_0, window_bounds = array<i64: 1, 8, 2, 96>}, {pipeline_mode = #tpu.pipeline_mode<synchronous>, transform_indices = @transform_1, window_bounds = array<i64: 8, 2, 1>}, {transform_indices = @transform_2, window_bounds = array<i64: 1, 32, 96>}, {transform_indices = @transform_3, window_bounds = array<i64: 1, 1, 96>}, {transform_indices = @transform_4, window_bounds = array<i64: 1, 8, 2, 32>}, {transform_indices = @transform_5, window_bounds = array<i64: 1, 2, 32>}]} {
    %c0 = arith.constant 0 : index
    %c0_0 = arith.constant 0 : index
    %c0_1 = arith.constant 0 : index
    %0 = vector.load %arg3[%c0, %c0_0, %c0_1] : memref<1x32x96xf32, #tpu.memory_space<vmem>>, vector<1x32x96xf32>
    %1 = vector.shape_cast %0 : vector<1x32x96xf32> to vector<32x96xf32>
    %c0_2 = arith.constant 0 : index
    %c0_3 = arith.constant 0 : index
    %c0_4 = arith.constant 0 : index
    %2 = vector.load %arg4[%c0_2, %c0_3, %c0_4] : memref<1x1x96xf32, #tpu.memory_space<vmem>>, vector<1x1x96xf32>
    %3 = vector.shape_cast %2 : vector<1x1x96xf32> to vector<1x96xf32>
    %cst = arith.constant 0.000000e+00 : f32
    %4 = vector.broadcast %cst : f32 to vector<2x32xf32>
    %c0_i32 = arith.constant 0 : i32
    %c2_i32 = arith.constant 2 : i32
    %5 = arith.muli %c2_i32, %c0_i32 : i32
    %c7_i32 = arith.constant 7 : i32
    %6 = arith.subi %c7_i32, %5 : i32
    %7 = arith.muli %arg0, %6 : i32
    %8 = arith.addi %c0_i32, %7 : i32
    %c0_5 = arith.constant 0 : index
    %9 = arith.index_cast %8 : i32 to index
    %c0_6 = arith.constant 0 : index
    %c0_7 = arith.constant 0 : index
    %10 = vector.load %arg1[%c0_5, %9, %c0_6, %c0_7] : memref<1x8x2x96xf32, #tpu.memory_space<vmem>>, vector<1x1x2x96xf32>
    %11 = vector.shape_cast %10 : vector<1x1x2x96xf32> to vector<2x96xf32>
    %cst_8 = arith.constant dense<0.000000e+00> : vector<2x96xf32>
    %12 = tpu.matmul %4, %1, %cst_8 {dimension_numbers = #tpu.dot_dimension_numbers<[1], [0], [0], [1], [0, 0, 1, 1], [], []>} : vector<2x32xf32>, vector<32x96xf32>, vector<2x96xf32> -> vector<2x96xf32>
    %13 = vector.broadcast %3 : vector<1x96xf32> to vector<2x96xf32>
    %14 = arith.addf %12, %13 : vector<2x96xf32>
    %15 = vector.extract_strided_slice %11 {offsets = [0, 0], sizes = [2, 32], strides = [1, 1]} : vector<2x96xf32> to vector<2x32xf32>
    %16 = vector.extract_strided_slice %14 {offsets = [0, 0], sizes = [2, 32], strides = [1, 1]} : vector<2x96xf32> to vector<2x32xf32>
    %17 = arith.addf %15, %16 : vector<2x32xf32>
    %18 = arith.negf %17 : vector<2x32xf32>
    %19 = math.exp %18 : vector<2x32xf32>
    %cst_9 = arith.constant 1.000000e+00 : f32
    %20 = vector.broadcast %cst_9 : f32 to vector<2x32xf32>
    %21 = arith.addf %20, %19 : vector<2x32xf32>
    %22 = arith.divf %20, %21 : vector<2x32xf32>
    %23 = vector.extract_strided_slice %11 {offsets = [0, 32], sizes = [2, 32], strides = [1, 1]} : vector<2x96xf32> to vector<2x32xf32>
    %24 = vector.extract_strided_slice %14 {offsets = [0, 32], sizes = [2, 32], strides = [1, 1]} : vector<2x96xf32> to vector<2x32xf32>
    %25 = arith.addf %23, %24 : vector<2x32xf32>
    %26 = arith.negf %25 : vector<2x32xf32>
    %27 = math.exp %26 : vector<2x32xf32>
    %cst_10 = arith.constant 1.000000e+00 : f32
    %28 = vector.broadcast %cst_10 : f32 to vector<2x32xf32>
    %29 = arith.addf %28, %27 : vector<2x32xf32>
    %30 = arith.divf %28, %29 : vector<2x32xf32>
    %31 = vector.extract_strided_slice %11 {offsets = [0, 64], sizes = [2, 32], strides = [1, 1]} : vector<2x96xf32> to vector<2x32xf32>
    %32 = vector.extract_strided_slice %14 {offsets = [0, 64], sizes = [2, 32], strides = [1, 1]} : vector<2x96xf32> to vector<2x32xf32>
    %33 = arith.mulf %22, %32 : vector<2x32xf32>
    %34 = arith.addf %31, %33 : vector<2x32xf32>
    %35 = math.tanh %34 : vector<2x32xf32>
    %cst_11 = arith.constant 1.000000e+00 : f32
    %36 = vector.broadcast %cst_11 : f32 to vector<2x32xf32>
    %37 = arith.subf %36, %30 : vector<2x32xf32>
    %38 = arith.mulf %37, %35 : vector<2x32xf32>
    %39 = arith.mulf %30, %4 : vector<2x32xf32>
    %40 = arith.addf %38, %39 : vector<2x32xf32>
    %41 = arith.index_cast %8 : i32 to index
    %c0_12 = arith.constant 0 : index
    %c0_13 = arith.constant 0 : index
    %42 = vector.load %arg2[%41, %c0_12, %c0_13] : memref<8x2x1xf32, #tpu.memory_space<vmem>>, vector<1x2x1xf32>
    %43 = vector.shape_cast %42 : vector<1x2x1xf32> to vector<2x1xf32>
    %cst_14 = arith.constant 5.000000e-01 : f32
    %44 = vector.broadcast %cst_14 : f32 to vector<2x1xf32>
    %45 = arith.cmpf ogt, %43, %44 : vector<2x1xf32>
    %46 = vector.shape_cast %45 : vector<2x1xi1> to vector<2x1xi1>
    %47 = vector.broadcast %46 : vector<2x1xi1> to vector<2x32xi1>
    %48 = arith.select %47, %40, %4 : vector<2x32xi1>, vector<2x32xf32>
    %cst_15 = arith.constant 0.000000e+00 : f32
    %49 = vector.shape_cast %45 : vector<2x1xi1> to vector<2x1xi1>
    %50 = vector.broadcast %49 : vector<2x1xi1> to vector<2x32xi1>
    %51 = vector.broadcast %cst_15 : f32 to vector<2x32xf32>
    %52 = arith.select %50, %40, %51 : vector<2x32xi1>, vector<2x32xf32>
    %c0_16 = arith.constant 0 : index
    %53 = arith.index_cast %8 : i32 to index
    %c0_17 = arith.constant 0 : index
    %c0_18 = arith.constant 0 : index
    %54 = vector.load %arg5[%c0_16, %53, %c0_17, %c0_18] : memref<1x8x2x32xf32, #tpu.memory_space<vmem>>, vector<1x1x2x32xf32>
    %55 = vector.shape_cast %54 : vector<1x1x2x32xf32> to vector<2x32xf32>
    %56 = vector.shape_cast %52 : vector<2x32xf32> to vector<1x1x2x32xf32>
    tpu.vector_store %arg5[%c0_16, %53, %c0_17, %c0_18], %56 {strides = array<i32>} : memref<1x8x2x32xf32, #tpu.memory_space<vmem>>, vector<1x1x2x32xf32>,
    %c1_i32 = arith.constant 1 : i32
    %c2_i32_19 = arith.constant 2 : i32
    %57 = arith.muli %c2_i32_19, %c1_i32 : i32
    %c7_i32_20 = arith.constant 7 : i32
    %58 = arith.subi %c7_i32_20, %57 : i32
    %59 = arith.muli %arg0, %58 : i32
    %60 = arith.addi %c1_i32, %59 : i32
    %c0_21 = arith.constant 0 : index
    %61 = arith.index_cast %60 : i32 to index
    %c0_22 = arith.constant 0 : index
    %c0_23 = arith.constant 0 : index
    %62 = vector.load %arg1[%c0_21, %61, %c0_22, %c0_23] : memref<1x8x2x96xf32, #tpu.memory_space<vmem>>, vector<1x1x2x96xf32>
    %63 = vector.shape_cast %62 : vector<1x1x2x96xf32> to vector<2x96xf32>
    %cst_24 = arith.constant dense<0.000000e+00> : vector<2x96xf32>
    %64 = tpu.matmul %48, %1, %cst_24 {dimension_numbers = #tpu.dot_dimension_numbers<[1], [0], [0], [1], [0, 0, 1, 1], [], []>} : vector<2x32xf32>, vector<32x96xf32>, vector<2x96xf32> -> vector<2x96xf32>
    %65 = vector.broadcast %3 : vector<1x96xf32> to vector<2x96xf32>
    %66 = arith.addf %64, %65 : vector<2x96xf32>
    %67 = vector.extract_strided_slice %63 {offsets = [0, 0], sizes = [2, 32], strides = [1, 1]} : vector<2x96xf32> to vector<2x32xf32>
    %68 = vector.extract_strided_slice %66 {offsets = [0, 0], sizes = [2, 32], strides = [1, 1]} : vector<2x96xf32> to vector<2x32xf32>
    %69 = arith.addf %67, %68 : vector<2x32xf32>
    %70 = arith.negf %69 : vector<2x32xf32>
    %71 = math.exp %70 : vector<2x32xf32>
    %cst_25 = arith.constant 1.000000e+00 : f32
    %72 = vector.broadcast %cst_25 : f32 to vector<2x32xf32>
    %73 = arith.addf %72, %71 : vector<2x32xf32>
    %74 = arith.divf %72, %73 : vector<2x32xf32>
    %75 = vector.extract_strided_slice %63 {offsets = [0, 32], sizes = [2, 32], strides = [1, 1]} : vector<2x96xf32> to vector<2x32xf32>
    %76 = vector.extract_strided_slice %66 {offsets = [0, 32], sizes = [2, 32], strides = [1, 1]} : vector<2x96xf32> to vector<2x32xf32>
    %77 = arith.addf %75, %76 : vector<2x32xf32>
    %78 = arith.negf %77 : vector<2x32xf32>
    %79 = math.exp %78 : vector<2x32xf32>
    %cst_26 = arith.constant 1.000000e+00 : f32
    %80 = vector.broadcast %cst_26 : f32 to vector<2x32xf32>
    %81 = arith.addf %80, %79 : vector<2x32xf32>
    %82 = arith.divf %80, %81 : vector<2x32xf32>
    %83 = vector.extract_strided_slice %63 {offsets = [0, 64], sizes = [2, 32], strides = [1, 1]} : vector<2x96xf32> to vector<2x32xf32>
    %84 = vector.extract_strided_slice %66 {offsets = [0, 64], sizes = [2, 32], strides = [1, 1]} : vector<2x96xf32> to vector<2x32xf32>
    %85 = arith.mulf %74, %84 : vector<2x32xf32>
    %86 = arith.addf %83, %85 : vector<2x32xf32>
    %87 = math.tanh %86 : vector<2x32xf32>
    %cst_27 = arith.constant 1.000000e+00 : f32
    %88 = vector.broadcast %cst_27 : f32 to vector<2x32xf32>
    %89 = arith.subf %88, %82 : vector<2x32xf32>
    %90 = arith.mulf %89, %87 : vector<2x32xf32>
    %91 = arith.mulf %82, %48 : vector<2x32xf32>
    %92 = arith.addf %90, %91 : vector<2x32xf32>
    %93 = arith.index_cast %60 : i32 to index
    %c0_28 = arith.constant 0 : index
    %c0_29 = arith.constant 0 : index
    %94 = vector.load %arg2[%93, %c0_28, %c0_29] : memref<8x2x1xf32, #tpu.memory_space<vmem>>, vector<1x2x1xf32>
    %95 = vector.shape_cast %94 : vector<1x2x1xf32> to vector<2x1xf32>
    %cst_30 = arith.constant 5.000000e-01 : f32
    %96 = vector.broadcast %cst_30 : f32 to vector<2x1xf32>
    %97 = arith.cmpf ogt, %95, %96 : vector<2x1xf32>
    %98 = vector.shape_cast %97 : vector<2x1xi1> to vector<2x1xi1>
    %99 = vector.broadcast %98 : vector<2x1xi1> to vector<2x32xi1>
    %100 = arith.select %99, %92, %48 : vector<2x32xi1>, vector<2x32xf32>
    %cst_31 = arith.constant 0.000000e+00 : f32
    %101 = vector.shape_cast %97 : vector<2x1xi1> to vector<2x1xi1>
    %102 = vector.broadcast %101 : vector<2x1xi1> to vector<2x32xi1>
    %103 = vector.broadcast %cst_31 : f32 to vector<2x32xf32>
    %104 = arith.select %102, %92, %103 : vector<2x32xi1>, vector<2x32xf32>
    %c0_32 = arith.constant 0 : index
    %105 = arith.index_cast %60 : i32 to index
    %c0_33 = arith.constant 0 : index
    %c0_34 = arith.constant 0 : index
    %106 = vector.load %arg5[%c0_32, %105, %c0_33, %c0_34] : memref<1x8x2x32xf32, #tpu.memory_space<vmem>>, vector<1x1x2x32xf32>
    %107 = vector.shape_cast %106 : vector<1x1x2x32xf32> to vector<2x32xf32>
    %108 = vector.shape_cast %104 : vector<2x32xf32> to vector<1x1x2x32xf32>
    tpu.vector_store %arg5[%c0_32, %105, %c0_33, %c0_34], %108 {strides = array<i32>} : memref<1x8x2x32xf32, #tpu.memory_space<vmem>>, vector<1x1x2x32xf32>,
    %c2_i32_35 = arith.constant 2 : i32
    %c2_i32_36 = arith.constant 2 : i32
    %109 = arith.muli %c2_i32_36, %c2_i32_35 : i32
    %c7_i32_37 = arith.constant 7 : i32
    %110 = arith.subi %c7_i32_37, %109 : i32
    %111 = arith.muli %arg0, %110 : i32
    %112 = arith.addi %c2_i32_35, %111 : i32
    %c0_38 = arith.constant 0 : index
    %113 = arith.index_cast %112 : i32 to index
    %c0_39 = arith.constant 0 : index
    %c0_40 = arith.constant 0 : index
    %114 = vector.load %arg1[%c0_38, %113, %c0_39, %c0_40] : memref<1x8x2x96xf32, #tpu.memory_space<vmem>>, vector<1x1x2x96xf32>
    %115 = vector.shape_cast %114 : vector<1x1x2x96xf32> to vector<2x96xf32>
    %cst_41 = arith.constant dense<0.000000e+00> : vector<2x96xf32>
    %116 = tpu.matmul %100, %1, %cst_41 {dimension_numbers = #tpu.dot_dimension_numbers<[1], [0], [0], [1], [0, 0, 1, 1], [], []>} : vector<2x32xf32>, vector<32x96xf32>, vector<2x96xf32> -> vector<2x96xf32>
    %117 = vector.broadcast %3 : vector<1x96xf32> to vector<2x96xf32>
    %118 = arith.addf %116, %117 : vector<2x96xf32>
    %119 = vector.extract_strided_slice %115 {offsets = [0, 0], sizes = [2, 32], strides = [1, 1]} : vector<2x96xf32> to vector<2x32xf32>
    %120 = vector.extract_strided_slice %118 {offsets = [0, 0], sizes = [2, 32], strides = [1, 1]} : vector<2x96xf32> to vector<2x32xf32>
    %121 = arith.addf %119, %120 : vector<2x32xf32>
    %122 = arith.negf %121 : vector<2x32xf32>
    %123 = math.exp %122 : vector<2x32xf32>
    %cst_42 = arith.constant 1.000000e+00 : f32
    %124 = vector.broadcast %cst_42 : f32 to vector<2x32xf32>
    %125 = arith.addf %124, %123 : vector<2x32xf32>
    %126 = arith.divf %124, %125 : vector<2x32xf32>
    %127 = vector.extract_strided_slice %115 {offsets = [0, 32], sizes = [2, 32], strides = [1, 1]} : vector<2x96xf32> to vector<2x32xf32>
    %128 = vector.extract_strided_slice %118 {offsets = [0, 32], sizes = [2, 32], strides = [1, 1]} : vector<2x96xf32> to vector<2x32xf32>
    %129 = arith.addf %127, %128 : vector<2x32xf32>
    %130 = arith.negf %129 : vector<2x32xf32>
    %131 = math.exp %130 : vector<2x32xf32>
    %cst_43 = arith.constant 1.000000e+00 : f32
    %132 = vector.broadcast %cst_43 : f32 to vector<2x32xf32>
    %133 = arith.addf %132, %131 : vector<2x32xf32>
    %134 = arith.divf %132, %133 : vector<2x32xf32>
    %135 = vector.extract_strided_slice %115 {offsets = [0, 64], sizes = [2, 32], strides = [1, 1]} : vector<2x96xf32> to vector<2x32xf32>
    %136 = vector.extract_strided_slice %118 {offsets = [0, 64], sizes = [2, 32], strides = [1, 1]} : vector<2x96xf32> to vector<2x32xf32>
    %137 = arith.mulf %126, %136 : vector<2x32xf32>
    %138 = arith.addf %135, %137 : vector<2x32xf32>
    %139 = math.tanh %138 : vector<2x32xf32>
    %cst_44 = arith.constant 1.000000e+00 : f32
    %140 = vector.broadcast %cst_44 : f32 to vector<2x32xf32>
    %141 = arith.subf %140, %134 : vector<2x32xf32>
    %142 = arith.mulf %141, %139 : vector<2x32xf32>
    %143 = arith.mulf %134, %100 : vector<2x32xf32>
    %144 = arith.addf %142, %143 : vector<2x32xf32>
    %145 = arith.index_cast %112 : i32 to index
    %c0_45 = arith.constant 0 : index
    %c0_46 = arith.constant 0 : index
    %146 = vector.load %arg2[%145, %c0_45, %c0_46] : memref<8x2x1xf32, #tpu.memory_space<vmem>>, vector<1x2x1xf32>
    %147 = vector.shape_cast %146 : vector<1x2x1xf32> to vector<2x1xf32>
    %cst_47 = arith.constant 5.000000e-01 : f32
    %148 = vector.broadcast %cst_47 : f32 to vector<2x1xf32>
    %149 = arith.cmpf ogt, %147, %148 : vector<2x1xf32>
    %150 = vector.shape_cast %149 : vector<2x1xi1> to vector<2x1xi1>
    %151 = vector.broadcast %150 : vector<2x1xi1> to vector<2x32xi1>
    %152 = arith.select %151, %144, %100 : vector<2x32xi1>, vector<2x32xf32>
    %cst_48 = arith.constant 0.000000e+00 : f32
    %153 = vector.shape_cast %149 : vector<2x1xi1> to vector<2x1xi1>
    %154 = vector.broadcast %153 : vector<2x1xi1> to vector<2x32xi1>
    %155 = vector.broadcast %cst_48 : f32 to vector<2x32xf32>
    %156 = arith.select %154, %144, %155 : vector<2x32xi1>, vector<2x32xf32>
    %c0_49 = arith.constant 0 : index
    %157 = arith.index_cast %112 : i32 to index
    %c0_50 = arith.constant 0 : index
    %c0_51 = arith.constant 0 : index
    %158 = vector.load %arg5[%c0_49, %157, %c0_50, %c0_51] : memref<1x8x2x32xf32, #tpu.memory_space<vmem>>, vector<1x1x2x32xf32>
    %159 = vector.shape_cast %158 : vector<1x1x2x32xf32> to vector<2x32xf32>
    %160 = vector.shape_cast %156 : vector<2x32xf32> to vector<1x1x2x32xf32>
    tpu.vector_store %arg5[%c0_49, %157, %c0_50, %c0_51], %160 {strides = array<i32>} : memref<1x8x2x32xf32, #tpu.memory_space<vmem>>, vector<1x1x2x32xf32>,
    %c3_i32 = arith.constant 3 : i32
    %c2_i32_52 = arith.constant 2 : i32
    %161 = arith.muli %c2_i32_52, %c3_i32 : i32
    %c7_i32_53 = arith.constant 7 : i32
    %162 = arith.subi %c7_i32_53, %161 : i32
    %163 = arith.muli %arg0, %162 : i32
    %164 = arith.addi %c3_i32, %163 : i32
    %c0_54 = arith.constant 0 : index
    %165 = arith.index_cast %164 : i32 to index
    %c0_55 = arith.constant 0 : index
    %c0_56 = arith.constant 0 : index
    %166 = vector.load %arg1[%c0_54, %165, %c0_55, %c0_56] : memref<1x8x2x96xf32, #tpu.memory_space<vmem>>, vector<1x1x2x96xf32>
    %167 = vector.shape_cast %166 : vector<1x1x2x96xf32> to vector<2x96xf32>
    %cst_57 = arith.constant dense<0.000000e+00> : vector<2x96xf32>
    %168 = tpu.matmul %152, %1, %cst_57 {dimension_numbers = #tpu.dot_dimension_numbers<[1], [0], [0], [1], [0, 0, 1, 1], [], []>} : vector<2x32xf32>, vector<32x96xf32>, vector<2x96xf32> -> vector<2x96xf32>
    %169 = vector.broadcast %3 : vector<1x96xf32> to vector<2x96xf32>
    %170 = arith.addf %168, %169 : vector<2x96xf32>
    %171 = vector.extract_strided_slice %167 {offsets = [0, 0], sizes = [2, 32], strides = [1, 1]} : vector<2x96xf32> to vector<2x32xf32>
    %172 = vector.extract_strided_slice %170 {offsets = [0, 0], sizes = [2, 32], strides = [1, 1]} : vector<2x96xf32> to vector<2x32xf32>
    %173 = arith.addf %171, %172 : vector<2x32xf32>
    %174 = arith.negf %173 : vector<2x32xf32>
    %175 = math.exp %174 : vector<2x32xf32>
    %cst_58 = arith.constant 1.000000e+00 : f32
    %176 = vector.broadcast %cst_58 : f32 to vector<2x32xf32>
    %177 = arith.addf %176, %175 : vector<2x32xf32>
    %178 = arith.divf %176, %177 : vector<2x32xf32>
    %179 = vector.extract_strided_slice %167 {offsets = [0, 32], sizes = [2, 32], strides = [1, 1]} : vector<2x96xf32> to vector<2x32xf32>
    %180 = vector.extract_strided_slice %170 {offsets = [0, 32], sizes = [2, 32], strides = [1, 1]} : vector<2x96xf32> to vector<2x32xf32>
    %181 = arith.addf %179, %180 : vector<2x32xf32>
    %182 = arith.negf %181 : vector<2x32xf32>
    %183 = math.exp %182 : vector<2x32xf32>
    %cst_59 = arith.constant 1.000000e+00 : f32
    %184 = vector.broadcast %cst_59 : f32 to vector<2x32xf32>
    %185 = arith.addf %184, %183 : vector<2x32xf32>
    %186 = arith.divf %184, %185 : vector<2x32xf32>
    %187 = vector.extract_strided_slice %167 {offsets = [0, 64], sizes = [2, 32], strides = [1, 1]} : vector<2x96xf32> to vector<2x32xf32>
    %188 = vector.extract_strided_slice %170 {offsets = [0, 64], sizes = [2, 32], strides = [1, 1]} : vector<2x96xf32> to vector<2x32xf32>
    %189 = arith.mulf %178, %188 : vector<2x32xf32>
    %190 = arith.addf %187, %189 : vector<2x32xf32>
    %191 = math.tanh %190 : vector<2x32xf32>
    %cst_60 = arith.constant 1.000000e+00 : f32
    %192 = vector.broadcast %cst_60 : f32 to vector<2x32xf32>
    %193 = arith.subf %192, %186 : vector<2x32xf32>
    %194 = arith.mulf %193, %191 : vector<2x32xf32>
    %195 = arith.mulf %186, %152 : vector<2x32xf32>
    %196 = arith.addf %194, %195 : vector<2x32xf32>
    %197 = arith.index_cast %164 : i32 to index
    %c0_61 = arith.constant 0 : index
    %c0_62 = arith.constant 0 : index
    %198 = vector.load %arg2[%197, %c0_61, %c0_62] : memref<8x2x1xf32, #tpu.memory_space<vmem>>, vector<1x2x1xf32>
    %199 = vector.shape_cast %198 : vector<1x2x1xf32> to vector<2x1xf32>
    %cst_63 = arith.constant 5.000000e-01 : f32
    %200 = vector.broadcast %cst_63 : f32 to vector<2x1xf32>
    %201 = arith.cmpf ogt, %199, %200 : vector<2x1xf32>
    %202 = vector.shape_cast %201 : vector<2x1xi1> to vector<2x1xi1>
    %203 = vector.broadcast %202 : vector<2x1xi1> to vector<2x32xi1>
    %204 = arith.select %203, %196, %152 : vector<2x32xi1>, vector<2x32xf32>
    %cst_64 = arith.constant 0.000000e+00 : f32
    %205 = vector.shape_cast %201 : vector<2x1xi1> to vector<2x1xi1>
    %206 = vector.broadcast %205 : vector<2x1xi1> to vector<2x32xi1>
    %207 = vector.broadcast %cst_64 : f32 to vector<2x32xf32>
    %208 = arith.select %206, %196, %207 : vector<2x32xi1>, vector<2x32xf32>
    %c0_65 = arith.constant 0 : index
    %209 = arith.index_cast %164 : i32 to index
    %c0_66 = arith.constant 0 : index
    %c0_67 = arith.constant 0 : index
    %210 = vector.load %arg5[%c0_65, %209, %c0_66, %c0_67] : memref<1x8x2x32xf32, #tpu.memory_space<vmem>>, vector<1x1x2x32xf32>
    %211 = vector.shape_cast %210 : vector<1x1x2x32xf32> to vector<2x32xf32>
    %212 = vector.shape_cast %208 : vector<2x32xf32> to vector<1x1x2x32xf32>
    tpu.vector_store %arg5[%c0_65, %209, %c0_66, %c0_67], %212 {strides = array<i32>} : memref<1x8x2x32xf32, #tpu.memory_space<vmem>>, vector<1x1x2x32xf32>,
    %c4_i32 = arith.constant 4 : i32
    %c2_i32_68 = arith.constant 2 : i32
    %213 = arith.muli %c2_i32_68, %c4_i32 : i32
    %c7_i32_69 = arith.constant 7 : i32
    %214 = arith.subi %c7_i32_69, %213 : i32
    %215 = arith.muli %arg0, %214 : i32
    %216 = arith.addi %c4_i32, %215 : i32
    %c0_70 = arith.constant 0 : index
    %217 = arith.index_cast %216 : i32 to index
    %c0_71 = arith.constant 0 : index
    %c0_72 = arith.constant 0 : index
    %218 = vector.load %arg1[%c0_70, %217, %c0_71, %c0_72] : memref<1x8x2x96xf32, #tpu.memory_space<vmem>>, vector<1x1x2x96xf32>
    %219 = vector.shape_cast %218 : vector<1x1x2x96xf32> to vector<2x96xf32>
    %cst_73 = arith.constant dense<0.000000e+00> : vector<2x96xf32>
    %220 = tpu.matmul %204, %1, %cst_73 {dimension_numbers = #tpu.dot_dimension_numbers<[1], [0], [0], [1], [0, 0, 1, 1], [], []>} : vector<2x32xf32>, vector<32x96xf32>, vector<2x96xf32> -> vector<2x96xf32>
    %221 = vector.broadcast %3 : vector<1x96xf32> to vector<2x96xf32>
    %222 = arith.addf %220, %221 : vector<2x96xf32>
    %223 = vector.extract_strided_slice %219 {offsets = [0, 0], sizes = [2, 32], strides = [1, 1]} : vector<2x96xf32> to vector<2x32xf32>
    %224 = vector.extract_strided_slice %222 {offsets = [0, 0], sizes = [2, 32], strides = [1, 1]} : vector<2x96xf32> to vector<2x32xf32>
    %225 = arith.addf %223, %224 : vector<2x32xf32>
    %226 = arith.negf %225 : vector<2x32xf32>
    %227 = math.exp %226 : vector<2x32xf32>
    %cst_74 = arith.constant 1.000000e+00 : f32
    %228 = vector.broadcast %cst_74 : f32 to vector<2x32xf32>
    %229 = arith.addf %228, %227 : vector<2x32xf32>
    %230 = arith.divf %228, %229 : vector<2x32xf32>
    %231 = vector.extract_strided_slice %219 {offsets = [0, 32], sizes = [2, 32], strides = [1, 1]} : vector<2x96xf32> to vector<2x32xf32>
    %232 = vector.extract_strided_slice %222 {offsets = [0, 32], sizes = [2, 32], strides = [1, 1]} : vector<2x96xf32> to vector<2x32xf32>
    %233 = arith.addf %231, %232 : vector<2x32xf32>
    %234 = arith.negf %233 : vector<2x32xf32>
    %235 = math.exp %234 : vector<2x32xf32>
    %cst_75 = arith.constant 1.000000e+00 : f32
    %236 = vector.broadcast %cst_75 : f32 to vector<2x32xf32>
    %237 = arith.addf %236, %235 : vector<2x32xf32>
    %238 = arith.divf %236, %237 : vector<2x32xf32>
    %239 = vector.extract_strided_slice %219 {offsets = [0, 64], sizes = [2, 32], strides = [1, 1]} : vector<2x96xf32> to vector<2x32xf32>
    %240 = vector.extract_strided_slice %222 {offsets = [0, 64], sizes = [2, 32], strides = [1, 1]} : vector<2x96xf32> to vector<2x32xf32>
    %241 = arith.mulf %230, %240 : vector<2x32xf32>
    %242 = arith.addf %239, %241 : vector<2x32xf32>
    %243 = math.tanh %242 : vector<2x32xf32>
    %cst_76 = arith.constant 1.000000e+00 : f32
    %244 = vector.broadcast %cst_76 : f32 to vector<2x32xf32>
    %245 = arith.subf %244, %238 : vector<2x32xf32>
    %246 = arith.mulf %245, %243 : vector<2x32xf32>
    %247 = arith.mulf %238, %204 : vector<2x32xf32>
    %248 = arith.addf %246, %247 : vector<2x32xf32>
    %249 = arith.index_cast %216 : i32 to index
    %c0_77 = arith.constant 0 : index
    %c0_78 = arith.constant 0 : index
    %250 = vector.load %arg2[%249, %c0_77, %c0_78] : memref<8x2x1xf32, #tpu.memory_space<vmem>>, vector<1x2x1xf32>
    %251 = vector.shape_cast %250 : vector<1x2x1xf32> to vector<2x1xf32>
    %cst_79 = arith.constant 5.000000e-01 : f32
    %252 = vector.broadcast %cst_79 : f32 to vector<2x1xf32>
    %253 = arith.cmpf ogt, %251, %252 : vector<2x1xf32>
    %254 = vector.shape_cast %253 : vector<2x1xi1> to vector<2x1xi1>
    %255 = vector.broadcast %254 : vector<2x1xi1> to vector<2x32xi1>
    %256 = arith.select %255, %248, %204 : vector<2x32xi1>, vector<2x32xf32>
    %cst_80 = arith.constant 0.000000e+00 : f32
    %257 = vector.shape_cast %253 : vector<2x1xi1> to vector<2x1xi1>
    %258 = vector.broadcast %257 : vector<2x1xi1> to vector<2x32xi1>
    %259 = vector.broadcast %cst_80 : f32 to vector<2x32xf32>
    %260 = arith.select %258, %248, %259 : vector<2x32xi1>, vector<2x32xf32>
    %c0_81 = arith.constant 0 : index
    %261 = arith.index_cast %216 : i32 to index
    %c0_82 = arith.constant 0 : index
    %c0_83 = arith.constant 0 : index
    %262 = vector.load %arg5[%c0_81, %261, %c0_82, %c0_83] : memref<1x8x2x32xf32, #tpu.memory_space<vmem>>, vector<1x1x2x32xf32>
    %263 = vector.shape_cast %262 : vector<1x1x2x32xf32> to vector<2x32xf32>
    %264 = vector.shape_cast %260 : vector<2x32xf32> to vector<1x1x2x32xf32>
    tpu.vector_store %arg5[%c0_81, %261, %c0_82, %c0_83], %264 {strides = array<i32>} : memref<1x8x2x32xf32, #tpu.memory_space<vmem>>, vector<1x1x2x32xf32>,
    %c5_i32 = arith.constant 5 : i32
    %c2_i32_84 = arith.constant 2 : i32
    %265 = arith.muli %c2_i32_84, %c5_i32 : i32
    %c7_i32_85 = arith.constant 7 : i32
    %266 = arith.subi %c7_i32_85, %265 : i32
    %267 = arith.muli %arg0, %266 : i32
    %268 = arith.addi %c5_i32, %267 : i32
    %c0_86 = arith.constant 0 : index
    %269 = arith.index_cast %268 : i32 to index
    %c0_87 = arith.constant 0 : index
    %c0_88 = arith.constant 0 : index
    %270 = vector.load %arg1[%c0_86, %269, %c0_87, %c0_88] : memref<1x8x2x96xf32, #tpu.memory_space<vmem>>, vector<1x1x2x96xf32>
    %271 = vector.shape_cast %270 : vector<1x1x2x96xf32> to vector<2x96xf32>
    %cst_89 = arith.constant dense<0.000000e+00> : vector<2x96xf32>
    %272 = tpu.matmul %256, %1, %cst_89 {dimension_numbers = #tpu.dot_dimension_numbers<[1], [0], [0], [1], [0, 0, 1, 1], [], []>} : vector<2x32xf32>, vector<32x96xf32>, vector<2x96xf32> -> vector<2x96xf32>
    %273 = vector.broadcast %3 : vector<1x96xf32> to vector<2x96xf32>
    %274 = arith.addf %272, %273 : vector<2x96xf32>
    %275 = vector.extract_strided_slice %271 {offsets = [0, 0], sizes = [2, 32], strides = [1, 1]} : vector<2x96xf32> to vector<2x32xf32>
    %276 = vector.extract_strided_slice %274 {offsets = [0, 0], sizes = [2, 32], strides = [1, 1]} : vector<2x96xf32> to vector<2x32xf32>
    %277 = arith.addf %275, %276 : vector<2x32xf32>
    %278 = arith.negf %277 : vector<2x32xf32>
    %279 = math.exp %278 : vector<2x32xf32>
    %cst_90 = arith.constant 1.000000e+00 : f32
    %280 = vector.broadcast %cst_90 : f32 to vector<2x32xf32>
    %281 = arith.addf %280, %279 : vector<2x32xf32>
    %282 = arith.divf %280, %281 : vector<2x32xf32>
    %283 = vector.extract_strided_slice %271 {offsets = [0, 32], sizes = [2, 32], strides = [1, 1]} : vector<2x96xf32> to vector<2x32xf32>
    %284 = vector.extract_strided_slice %274 {offsets = [0, 32], sizes = [2, 32], strides = [1, 1]} : vector<2x96xf32> to vector<2x32xf32>
    %285 = arith.addf %283, %284 : vector<2x32xf32>
    %286 = arith.negf %285 : vector<2x32xf32>
    %287 = math.exp %286 : vector<2x32xf32>
    %cst_91 = arith.constant 1.000000e+00 : f32
    %288 = vector.broadcast %cst_91 : f32 to vector<2x32xf32>
    %289 = arith.addf %288, %287 : vector<2x32xf32>
    %290 = arith.divf %288, %289 : vector<2x32xf32>
    %291 = vector.extract_strided_slice %271 {offsets = [0, 64], sizes = [2, 32], strides = [1, 1]} : vector<2x96xf32> to vector<2x32xf32>
    %292 = vector.extract_strided_slice %274 {offsets = [0, 64], sizes = [2, 32], strides = [1, 1]} : vector<2x96xf32> to vector<2x32xf32>
    %293 = arith.mulf %282, %292 : vector<2x32xf32>
    %294 = arith.addf %291, %293 : vector<2x32xf32>
    %295 = math.tanh %294 : vector<2x32xf32>
    %cst_92 = arith.constant 1.000000e+00 : f32
    %296 = vector.broadcast %cst_92 : f32 to vector<2x32xf32>
    %297 = arith.subf %296, %290 : vector<2x32xf32>
    %298 = arith.mulf %297, %295 : vector<2x32xf32>
    %299 = arith.mulf %290, %256 : vector<2x32xf32>
    %300 = arith.addf %298, %299 : vector<2x32xf32>
    %301 = arith.index_cast %268 : i32 to index
    %c0_93 = arith.constant 0 : index
    %c0_94 = arith.constant 0 : index
    %302 = vector.load %arg2[%301, %c0_93, %c0_94] : memref<8x2x1xf32, #tpu.memory_space<vmem>>, vector<1x2x1xf32>
    %303 = vector.shape_cast %302 : vector<1x2x1xf32> to vector<2x1xf32>
    %cst_95 = arith.constant 5.000000e-01 : f32
    %304 = vector.broadcast %cst_95 : f32 to vector<2x1xf32>
    %305 = arith.cmpf ogt, %303, %304 : vector<2x1xf32>
    %306 = vector.shape_cast %305 : vector<2x1xi1> to vector<2x1xi1>
    %307 = vector.broadcast %306 : vector<2x1xi1> to vector<2x32xi1>
    %308 = arith.select %307, %300, %256 : vector<2x32xi1>, vector<2x32xf32>
    %cst_96 = arith.constant 0.000000e+00 : f32
    %309 = vector.shape_cast %305 : vector<2x1xi1> to vector<2x1xi1>
    %310 = vector.broadcast %309 : vector<2x1xi1> to vector<2x32xi1>
    %311 = vector.broadcast %cst_96 : f32 to vector<2x32xf32>
    %312 = arith.select %310, %300, %311 : vector<2x32xi1>, vector<2x32xf32>
    %c0_97 = arith.constant 0 : index
    %313 = arith.index_cast %268 : i32 to index
    %c0_98 = arith.constant 0 : index
    %c0_99 = arith.constant 0 : index
    %314 = vector.load %arg5[%c0_97, %313, %c0_98, %c0_99] : memref<1x8x2x32xf32, #tpu.memory_space<vmem>>, vector<1x1x2x32xf32>
    %315 = vector.shape_cast %314 : vector<1x1x2x32xf32> to vector<2x32xf32>
    %316 = vector.shape_cast %312 : vector<2x32xf32> to vector<1x1x2x32xf32>
    tpu.vector_store %arg5[%c0_97, %313, %c0_98, %c0_99], %316 {strides = array<i32>} : memref<1x8x2x32xf32, #tpu.memory_space<vmem>>, vector<1x1x2x32xf32>,
    %c6_i32 = arith.constant 6 : i32
    %c2_i32_100 = arith.constant 2 : i32
    %317 = arith.muli %c2_i32_100, %c6_i32 : i32
    %c7_i32_101 = arith.constant 7 : i32
    %318 = arith.subi %c7_i32_101, %317 : i32
    %319 = arith.muli %arg0, %318 : i32
    %320 = arith.addi %c6_i32, %319 : i32
    %c0_102 = arith.constant 0 : index
    %321 = arith.index_cast %320 : i32 to index
    %c0_103 = arith.constant 0 : index
    %c0_104 = arith.constant 0 : index
    %322 = vector.load %arg1[%c0_102, %321, %c0_103, %c0_104] : memref<1x8x2x96xf32, #tpu.memory_space<vmem>>, vector<1x1x2x96xf32>
    %323 = vector.shape_cast %322 : vector<1x1x2x96xf32> to vector<2x96xf32>
    %cst_105 = arith.constant dense<0.000000e+00> : vector<2x96xf32>
    %324 = tpu.matmul %308, %1, %cst_105 {dimension_numbers = #tpu.dot_dimension_numbers<[1], [0], [0], [1], [0, 0, 1, 1], [], []>} : vector<2x32xf32>, vector<32x96xf32>, vector<2x96xf32> -> vector<2x96xf32>
    %325 = vector.broadcast %3 : vector<1x96xf32> to vector<2x96xf32>
    %326 = arith.addf %324, %325 : vector<2x96xf32>
    %327 = vector.extract_strided_slice %323 {offsets = [0, 0], sizes = [2, 32], strides = [1, 1]} : vector<2x96xf32> to vector<2x32xf32>
    %328 = vector.extract_strided_slice %326 {offsets = [0, 0], sizes = [2, 32], strides = [1, 1]} : vector<2x96xf32> to vector<2x32xf32>
    %329 = arith.addf %327, %328 : vector<2x32xf32>
    %330 = arith.negf %329 : vector<2x32xf32>
    %331 = math.exp %330 : vector<2x32xf32>
    %cst_106 = arith.constant 1.000000e+00 : f32
    %332 = vector.broadcast %cst_106 : f32 to vector<2x32xf32>
    %333 = arith.addf %332, %331 : vector<2x32xf32>
    %334 = arith.divf %332, %333 : vector<2x32xf32>
    %335 = vector.extract_strided_slice %323 {offsets = [0, 32], sizes = [2, 32], strides = [1, 1]} : vector<2x96xf32> to vector<2x32xf32>
    %336 = vector.extract_strided_slice %326 {offsets = [0, 32], sizes = [2, 32], strides = [1, 1]} : vector<2x96xf32> to vector<2x32xf32>
    %337 = arith.addf %335, %336 : vector<2x32xf32>
    %338 = arith.negf %337 : vector<2x32xf32>
    %339 = math.exp %338 : vector<2x32xf32>
    %cst_107 = arith.constant 1.000000e+00 : f32
    %340 = vector.broadcast %cst_107 : f32 to vector<2x32xf32>
    %341 = arith.addf %340, %339 : vector<2x32xf32>
    %342 = arith.divf %340, %341 : vector<2x32xf32>
    %343 = vector.extract_strided_slice %323 {offsets = [0, 64], sizes = [2, 32], strides = [1, 1]} : vector<2x96xf32> to vector<2x32xf32>
    %344 = vector.extract_strided_slice %326 {offsets = [0, 64], sizes = [2, 32], strides = [1, 1]} : vector<2x96xf32> to vector<2x32xf32>
    %345 = arith.mulf %334, %344 : vector<2x32xf32>
    %346 = arith.addf %343, %345 : vector<2x32xf32>
    %347 = math.tanh %346 : vector<2x32xf32>
    %cst_108 = arith.constant 1.000000e+00 : f32
    %348 = vector.broadcast %cst_108 : f32 to vector<2x32xf32>
    %349 = arith.subf %348, %342 : vector<2x32xf32>
    %350 = arith.mulf %349, %347 : vector<2x32xf32>
    %351 = arith.mulf %342, %308 : vector<2x32xf32>
    %352 = arith.addf %350, %351 : vector<2x32xf32>
    %353 = arith.index_cast %320 : i32 to index
    %c0_109 = arith.constant 0 : index
    %c0_110 = arith.constant 0 : index
    %354 = vector.load %arg2[%353, %c0_109, %c0_110] : memref<8x2x1xf32, #tpu.memory_space<vmem>>, vector<1x2x1xf32>
    %355 = vector.shape_cast %354 : vector<1x2x1xf32> to vector<2x1xf32>
    %cst_111 = arith.constant 5.000000e-01 : f32
    %356 = vector.broadcast %cst_111 : f32 to vector<2x1xf32>
    %357 = arith.cmpf ogt, %355, %356 : vector<2x1xf32>
    %358 = vector.shape_cast %357 : vector<2x1xi1> to vector<2x1xi1>
    %359 = vector.broadcast %358 : vector<2x1xi1> to vector<2x32xi1>
    %360 = arith.select %359, %352, %308 : vector<2x32xi1>, vector<2x32xf32>
    %cst_112 = arith.constant 0.000000e+00 : f32
    %361 = vector.shape_cast %357 : vector<2x1xi1> to vector<2x1xi1>
    %362 = vector.broadcast %361 : vector<2x1xi1> to vector<2x32xi1>
    %363 = vector.broadcast %cst_112 : f32 to vector<2x32xf32>
    %364 = arith.select %362, %352, %363 : vector<2x32xi1>, vector<2x32xf32>
    %c0_113 = arith.constant 0 : index
    %365 = arith.index_cast %320 : i32 to index
    %c0_114 = arith.constant 0 : index
    %c0_115 = arith.constant 0 : index
    %366 = vector.load %arg5[%c0_113, %365, %c0_114, %c0_115] : memref<1x8x2x32xf32, #tpu.memory_space<vmem>>, vector<1x1x2x32xf32>
    %367 = vector.shape_cast %366 : vector<1x1x2x32xf32> to vector<2x32xf32>
    %368 = vector.shape_cast %364 : vector<2x32xf32> to vector<1x1x2x32xf32>
    tpu.vector_store %arg5[%c0_113, %365, %c0_114, %c0_115], %368 {strides = array<i32>} : memref<1x8x2x32xf32, #tpu.memory_space<vmem>>, vector<1x1x2x32xf32>,
    %c7_i32_116 = arith.constant 7 : i32
    %c2_i32_117 = arith.constant 2 : i32
    %369 = arith.muli %c2_i32_117, %c7_i32_116 : i32
    %c7_i32_118 = arith.constant 7 : i32
    %370 = arith.subi %c7_i32_118, %369 : i32
    %371 = arith.muli %arg0, %370 : i32
    %372 = arith.addi %c7_i32_116, %371 : i32
    %c0_119 = arith.constant 0 : index
    %373 = arith.index_cast %372 : i32 to index
    %c0_120 = arith.constant 0 : index
    %c0_121 = arith.constant 0 : index
    %374 = vector.load %arg1[%c0_119, %373, %c0_120, %c0_121] : memref<1x8x2x96xf32, #tpu.memory_space<vmem>>, vector<1x1x2x96xf32>
    %375 = vector.shape_cast %374 : vector<1x1x2x96xf32> to vector<2x96xf32>
    %cst_122 = arith.constant dense<0.000000e+00> : vector<2x96xf32>
    %376 = tpu.matmul %360, %1, %cst_122 {dimension_numbers = #tpu.dot_dimension_numbers<[1], [0], [0], [1], [0, 0, 1, 1], [], []>} : vector<2x32xf32>, vector<32x96xf32>, vector<2x96xf32> -> vector<2x96xf32>
    %377 = vector.broadcast %3 : vector<1x96xf32> to vector<2x96xf32>
    %378 = arith.addf %376, %377 : vector<2x96xf32>
    %379 = vector.extract_strided_slice %375 {offsets = [0, 0], sizes = [2, 32], strides = [1, 1]} : vector<2x96xf32> to vector<2x32xf32>
    %380 = vector.extract_strided_slice %378 {offsets = [0, 0], sizes = [2, 32], strides = [1, 1]} : vector<2x96xf32> to vector<2x32xf32>
    %381 = arith.addf %379, %380 : vector<2x32xf32>
    %382 = arith.negf %381 : vector<2x32xf32>
    %383 = math.exp %382 : vector<2x32xf32>
    %cst_123 = arith.constant 1.000000e+00 : f32
    %384 = vector.broadcast %cst_123 : f32 to vector<2x32xf32>
    %385 = arith.addf %384, %383 : vector<2x32xf32>
    %386 = arith.divf %384, %385 : vector<2x32xf32>
    %387 = vector.extract_strided_slice %375 {offsets = [0, 32], sizes = [2, 32], strides = [1, 1]} : vector<2x96xf32> to vector<2x32xf32>
    %388 = vector.extract_strided_slice %378 {offsets = [0, 32], sizes = [2, 32], strides = [1, 1]} : vector<2x96xf32> to vector<2x32xf32>
    %389 = arith.addf %387, %388 : vector<2x32xf32>
    %390 = arith.negf %389 : vector<2x32xf32>
    %391 = math.exp %390 : vector<2x32xf32>
    %cst_124 = arith.constant 1.000000e+00 : f32
    %392 = vector.broadcast %cst_124 : f32 to vector<2x32xf32>
    %393 = arith.addf %392, %391 : vector<2x32xf32>
    %394 = arith.divf %392, %393 : vector<2x32xf32>
    %395 = vector.extract_strided_slice %375 {offsets = [0, 64], sizes = [2, 32], strides = [1, 1]} : vector<2x96xf32> to vector<2x32xf32>
    %396 = vector.extract_strided_slice %378 {offsets = [0, 64], sizes = [2, 32], strides = [1, 1]} : vector<2x96xf32> to vector<2x32xf32>
    %397 = arith.mulf %386, %396 : vector<2x32xf32>
    %398 = arith.addf %395, %397 : vector<2x32xf32>
    %399 = math.tanh %398 : vector<2x32xf32>
    %cst_125 = arith.constant 1.000000e+00 : f32
    %400 = vector.broadcast %cst_125 : f32 to vector<2x32xf32>
    %401 = arith.subf %400, %394 : vector<2x32xf32>
    %402 = arith.mulf %401, %399 : vector<2x32xf32>
    %403 = arith.mulf %394, %360 : vector<2x32xf32>
    %404 = arith.addf %402, %403 : vector<2x32xf32>
    %405 = arith.index_cast %372 : i32 to index
    %c0_126 = arith.constant 0 : index
    %c0_127 = arith.constant 0 : index
    %406 = vector.load %arg2[%405, %c0_126, %c0_127] : memref<8x2x1xf32, #tpu.memory_space<vmem>>, vector<1x2x1xf32>
    %407 = vector.shape_cast %406 : vector<1x2x1xf32> to vector<2x1xf32>
    %cst_128 = arith.constant 5.000000e-01 : f32
    %408 = vector.broadcast %cst_128 : f32 to vector<2x1xf32>
    %409 = arith.cmpf ogt, %407, %408 : vector<2x1xf32>
    %410 = vector.shape_cast %409 : vector<2x1xi1> to vector<2x1xi1>
    %411 = vector.broadcast %410 : vector<2x1xi1> to vector<2x32xi1>
    %412 = arith.select %411, %404, %360 : vector<2x32xi1>, vector<2x32xf32>
    %cst_129 = arith.constant 0.000000e+00 : f32
    %413 = vector.shape_cast %409 : vector<2x1xi1> to vector<2x1xi1>
    %414 = vector.broadcast %413 : vector<2x1xi1> to vector<2x32xi1>
    %415 = vector.broadcast %cst_129 : f32 to vector<2x32xf32>
    %416 = arith.select %414, %404, %415 : vector<2x32xi1>, vector<2x32xf32>
    %c0_130 = arith.constant 0 : index
    %417 = arith.index_cast %372 : i32 to index
    %c0_131 = arith.constant 0 : index
    %c0_132 = arith.constant 0 : index
    %418 = vector.load %arg5[%c0_130, %417, %c0_131, %c0_132] : memref<1x8x2x32xf32, #tpu.memory_space<vmem>>, vector<1x1x2x32xf32>
    %419 = vector.shape_cast %418 : vector<1x1x2x32xf32> to vector<2x32xf32>
    %420 = vector.shape_cast %416 : vector<2x32xf32> to vector<1x1x2x32xf32>
    tpu.vector_store %arg5[%c0_130, %417, %c0_131, %c0_132], %420 {strides = array<i32>} : memref<1x8x2x32xf32, #tpu.memory_space<vmem>>, vector<1x1x2x32xf32>,
    %c8_i32 = arith.constant 8 : i32
    %c0_133 = arith.constant 0 : index
    %c0_134 = arith.constant 0 : index
    %c0_135 = arith.constant 0 : index
    %421 = vector.load %arg6[%c0_133, %c0_134, %c0_135] : memref<1x2x32xf32, #tpu.memory_space<vmem>>, vector<1x2x32xf32>
    %422 = vector.shape_cast %421 : vector<1x2x32xf32> to vector<2x32xf32>
    %423 = vector.shape_cast %412 : vector<2x32xf32> to vector<1x2x32xf32>
    tpu.vector_store %arg6[%c0_133, %c0_134, %c0_135], %423 {strides = array<i32>} : memref<1x2x32xf32, #tpu.memory_space<vmem>>, vector<1x2x32xf32>,
    return
  }
  func.func @transform_0(%arg0: i32) -> (i32, i32, i32, i32) {
    %c0_i32 = arith.constant 0 : i32
    %c0_i32_0 = arith.constant 0 : i32
    %c0_i32_1 = arith.constant 0 : i32
    %c0_i32_2 = arith.constant 0 : i32
    return %arg0, %c0_i32, %c0_i32_0, %c0_i32_1 : i32, i32, i32, i32
  }
  func.func @transform_1(%arg0: i32) -> (i32, i32, i32) {
    %c0_i32 = arith.constant 0 : i32
    %c0_i32_0 = arith.constant 0 : i32
    %c0_i32_1 = arith.constant 0 : i32
    %c0_i32_2 = arith.constant 0 : i32
    return %c0_i32, %c0_i32_0, %c0_i32_1 : i32, i32, i32
  }
  func.func @transform_2(%arg0: i32) -> (i32, i32, i32) {
    %c0_i32 = arith.constant 0 : i32
    %c0_i32_0 = arith.constant 0 : i32
    %c0_i32_1 = arith.constant 0 : i32
    return %arg0, %c0_i32, %c0_i32_0 : i32, i32, i32
  }
  func.func @transform_3(%arg0: i32) -> (i32, i32, i32) {
    %c0_i32 = arith.constant 0 : i32
    %c0_i32_0 = arith.constant 0 : i32
    %c0_i32_1 = arith.constant 0 : i32
    return %arg0, %c0_i32, %c0_i32_0 : i32, i32, i32
  }
  func.func @transform_4(%arg0: i32) -> (i32, i32, i32, i32) {
    %c0_i32 = arith.constant 0 : i32
    %c0_i32_0 = arith.constant 0 : i32
    %c0_i32_1 = arith.constant 0 : i32
    %c0_i32_2 = arith.constant 0 : i32
    return %arg0, %c0_i32, %c0_i32_0, %c0_i32_1 : i32, i32, i32, i32
  }
  func.func @transform_5(%arg0: i32) -> (i32, i32, i32) {
    %c0_i32 = arith.constant 0 : i32
    %c0_i32_0 = arith.constant 0 : i32
    %c0_i32_1 = arith.constant 0 : i32
    return %arg0, %c0_i32, %c0_i32_0 : i32, i32, i32
  }
}

</mosaic_0001>

<llo_original>
// kernel: tpu_custom_call.1
$region0: #{tpu_custom_call.1}
  #allocation0 [shape = 'u32[]', space=smem, size = 0x4, offset = 0x4, fixed_abs, tag = 'smem constant byte address 0x4 - core index']
  #allocation1 [shape = 'u32[144,128]{1,0:T(1,128)}', space=vmem, size = 0x12000, scoped, tag = 'internal scratch']
  %s0 = inlined_call_operand.hbm [shape: f32[2,8,2,96], index: 0, kind: input, shape index: {}]
  %s1 = inlined_call_operand.vmem [shape: f32[8,2,1], index: 1, kind: input, shape index: {}]
  %s2 = inlined_call_operand.hbm [shape: f32[2,32,96], index: 2, kind: input, shape index: {}]
  %s3 = inlined_call_operand.vmem [shape: f32[2,1,96], index: 3, kind: input, shape index: {}]
  %s4 = inlined_call_operand.hbm [shape: f32[2,8,2,32], index: 4, kind: output, shape index: {0}]
  %s5 = inlined_call_operand.hbm [shape: f32[2,2,32], index: 5, kind: output, shape index: {1}]
  %6 = xla_tuple %s4, %s5
  %s7 = sld [smem:[#allocation0]]
  $region65: #{tpu_custom_call.1} parent=0
    _
  %s9 = ssub.s32 1, %s7
  %s10 = scalar_select 0, %s9, %s7
  $region1: #{tpu_custom_call.1} parent=0
    #allocation2 [shape = 'u8[16384]{0}', space=vmem, size = 0x4000, scoped, tag = 'input window, operand 0']
    #allocation3 [shape = 's32[2]{0}', space=sflag, size = 0x8, scoped, tag = 'scoped memory for tpu_custom_call.1']
    #allocation4 [shape = 's32[2]{0}', space=sflag, size = 0x8, scoped, tag = 'scoped memory for tpu_custom_call.1']
    #allocation5 [shape = 'u8[32768]{0}', space=vmem, size = 0x8000, scoped, tag = 'input window, operand 2']
    #allocation6 [shape = 's32[2]{0}', space=sflag, size = 0x8, scoped, tag = 'scoped memory for tpu_custom_call.1']
    #allocation7 [shape = 'u8[16384]{0}', space=vmem, size = 0x4000, scoped, tag = 'output window, operand 0']
    #allocation8 [shape = 'u8[2048]{0}', space=vmem, size = 0x800, scoped, tag = 'output window, operand 1']
    #allocation9 [shape = 's32[2]{0}', space=sflag, size = 0x8, scoped, tag = 'scoped memory for tpu_custom_call.1']
    %11 = vsyncpa [#allocation3], 0
    %s12 = scalar_lea.sflag [#allocation3], 1
    %13 = vsyncpa %s12, 0
    %14 = vsyncpa [#allocation6], 0
    %s15 = scalar_lea.sflag [#allocation6], 1
    %16 = vsyncpa %s15, 0
    %17 = vsyncpa [#allocation4], 0
    %s18 = scalar_lea.sflag [#allocation4], 1
    %19 = vsyncpa %s18, 0
    %20 = vsyncpa [#allocation9], 0
    %s21 = scalar_lea.sflag [#allocation9], 1
    %22 = vsyncpa %s21, 0
    loop: start=0, step=1, limit=4
    $region2: #{tpu_custom_call.1} parent=1 // loop_pre_header
      _
    $region3: #{tpu_custom_call.1} parent=1 // loop_header
      %s24 = sphi 0, %s28
      %p25 = scmp.ge.s32.totalorder %s24, 4
      %s34 = sphi 0, %s36
      %s37 = sphi 0, %s34
      %s38 = sphi 0, %s37
      %s54 = sphi 0, %s38
      %s58 = sphi 0, %s58
      %s60 = sphi 0, %s58
      %s61 = sphi 0, %s60
      %s75 = sphi 0, %s61
      %s81 = sphi 0, %s83
      %s84 = sphi 0, %s81
      %s85 = sphi 0, %s84
      %s101 = sphi 0, %s85
      %s107 = sphi 0, %s109
      %s110 = sphi 0, %s107
      %s111 = sphi 0, %s110
      %s127 = sphi 0, %s111
      %s133 = sphi 0, %s135
      %s136 = sphi 0, %s133
      %s137 = sphi 0, %s136
      %s153 = sphi 0, %s137
      %s159 = sphi 0, %s161
      %s162 = sphi 0, %s159
      %s163 = sphi 0, %s162
      %s179 = sphi 0, %s163
    $region4: #{tpu_custom_call.1} parent=1 // loop_header_branch
      %27 = sbr.rel (%p25) target = $region8
    $region5: #{tpu_custom_call.1} parent=1 // loop_body
      %s29 = ssub.s32 %s24, 1
      %s30 = ssub.s32 %s24, 2
      %s31 = sadd.s32 %s24, 1
      %s32 = ssub.s32 %s24, %s31
      %p33 = scmp.eq.s32.totalorder %s32, 0
      %s35 = sadd.s32 %s34, 1
      %s36 = scalar_select %p33, %s34, %s35
      %p39 = pneg %p33
      %p40 = scmp.eq.s32.totalorder %s24, 1
      %p41 = por %p39, %p40
      %p42 = scmp.ne.s32.totalorder %s34, %s37
      %p43 = scmp.eq.s32.totalorder %s24, 0
      %p44 = por %p42, %p43
      %p45 = scmp.ne.s32.totalorder %s34, %s37
      %p46 = scmp.eq.s32.totalorder %s29, 1
      %p47 = por %p45, %p46
      %p48 = scmp.ne.s32.totalorder %s37, %s38
      %p49 = scmp.eq.s32.totalorder %s29, 0
      %p50 = por %p48, %p49
      %p51 = scmp.ne.s32.totalorder %s37, %s38
      %p52 = scmp.eq.s32.totalorder %s30, 1
      %p53 = por %p51, %p52
      %p55 = scmp.ne.s32.totalorder %s38, %s54
      %p56 = scmp.eq.s32.totalorder %s30, 0
      %p57 = por %p55, %p56
      %s59 = sadd.s32 %s58, 1
      %p62 = scmp.eq.s32.totalorder %s24, 1
      %p63 = scmp.ne.s32.totalorder %s58, %s60
      %p64 = scmp.eq.s32.totalorder %s24, 0
      %p65 = por %p63, %p64
      %p66 = scmp.ne.s32.totalorder %s58, %s60
      %p67 = scmp.eq.s32.totalorder %s29, 1
      %p68 = por %p66, %p67
      %p69 = scmp.ne.s32.totalorder %s60, %s61
      %p70 = scmp.eq.s32.totalorder %s29, 0
      %p71 = por %p69, %p70
      %p72 = scmp.ne.s32.totalorder %s60, %s61
      %p73 = scmp.eq.s32.totalorder %s30, 1
      %p74 = por %p72, %p73
      %p76 = scmp.ne.s32.totalorder %s61, %s75
      %p77 = scmp.eq.s32.totalorder %s30, 0
      %p78 = por %p76, %p77
      %s79 = ssub.s32 %s24, %s31
      %p80 = scmp.eq.s32.totalorder %s79, 0
      %s82 = sadd.s32 %s81, 1
      %s83 = scalar_select %p80, %s81, %s82
      %p86 = pneg %p80
      %p87 = scmp.eq.s32.totalorder %s24, 1
      %p88 = por %p86, %p87
      %p89 = scmp.ne.s32.totalorder %s81, %s84
      %p90 = scmp.eq.s32.totalorder %s24, 0
      %p91 = por %p89, %p90
      %p92 = scmp.ne.s32.totalorder %s81, %s84
      %p93 = scmp.eq.s32.totalorder %s29, 1
      %p94 = por %p92, %p93
      %p95 = scmp.ne.s32.totalorder %s84, %s85
      %p96 = scmp.eq.s32.totalorder %s29, 0
      %p97 = por %p95, %p96
      %p98 = scmp.ne.s32.totalorder %s84, %s85
      %p99 = scmp.eq.s32.totalorder %s30, 1
      %p100 = por %p98, %p99
      %p102 = scmp.ne.s32.totalorder %s85, %s101
      %p103 = scmp.eq.s32.totalorder %s30, 0
      %p104 = por %p102, %p103
      %s105 = ssub.s32 %s24, %s31
      %p106 = scmp.eq.s32.totalorder %s105, 0
      %s108 = sadd.s32 %s107, 1
      %s109 = scalar_select %p106, %s107, %s108
      %p112 = pneg %p106
      %p113 = scmp.eq.s32.totalorder %s24, 1
      %p114 = por %p112, %p113
      %p115 = scmp.ne.s32.totalorder %s107, %s110
      %p116 = scmp.eq.s32.totalorder %s24, 0
      %p117 = por %p115, %p116
      %p118 = scmp.ne.s32.totalorder %s107, %s110
      %p119 = scmp.eq.s32.totalorder %s29, 1
      %p120 = por %p118, %p119
      %p121 = scmp.ne.s32.totalorder %s110, %s111
      %p122 = scmp.eq.s32.totalorder %s29, 0
      %p123 = por %p121, %p122
      %p124 = scmp.ne.s32.totalorder %s110, %s111
      %p125 = scmp.eq.s32.totalorder %s30, 1
      %p126 = por %p124, %p125
      %p128 = scmp.ne.s32.totalorder %s111, %s127
      %p129 = scmp.eq.s32.totalorder %s30, 0
      %p130 = por %p128, %p129
      %s131 = ssub.s32 %s24, %s31
      %p132 = scmp.eq.s32.totalorder %s131, 0
      %s134 = sadd.s32 %s133, 1
      %s135 = scalar_select %p132, %s133, %s134
      %p138 = pneg %p132
      %p139 = scmp.eq.s32.totalorder %s24, 1
      %p140 = por %p138, %p139
      %p141 = scmp.ne.s32.totalorder %s133, %s136
      %p142 = scmp.eq.s32.totalorder %s24, 0
      %p143 = por %p141, %p142
      %p144 = scmp.ne.s32.totalorder %s133, %s136
      %p145 = scmp.eq.s32.totalorder %s29, 1
      %p146 = por %p144, %p145
      %p147 = scmp.ne.s32.totalorder %s136, %s137
      %p148 = scmp.eq.s32.totalorder %s29, 0
      %p149 = por %p147, %p148
      %p150 = scmp.ne.s32.totalorder %s136, %s137
      %p151 = scmp.eq.s32.totalorder %s30, 1
      %p152 = por %p150, %p151
      %p154 = scmp.ne.s32.totalorder %s137, %s153
      %p155 = scmp.eq.s32.totalorder %s30, 0
      %p156 = por %p154, %p155
      %s157 = ssub.s32 %s24, %s31
      %p158 = scmp.eq.s32.totalorder %s157, 0
      %s160 = sadd.s32 %s159, 1
      %s161 = scalar_select %p158, %s159, %s160
      %p164 = pneg %p158
      %p165 = scmp.eq.s32.totalorder %s24, 1
      %p166 = por %p164, %p165
      %p167 = scmp.ne.s32.totalorder %s159, %s162
      %p168 = scmp.eq.s32.totalorder %s24, 0
      %p169 = por %p167, %p168
      %p170 = scmp.ne.s32.totalorder %s159, %s162
      %p171 = scmp.eq.s32.totalorder %s29, 1
      %p172 = por %p170, %p171
      %p173 = scmp.ne.s32.totalorder %s162, %s163
      %p174 = scmp.eq.s32.totalorder %s29, 0
      %p175 = por %p173, %p174
      %p176 = scmp.ne.s32.totalorder %s162, %s163
      %p177 = scmp.eq.s32.totalorder %s30, 1
      %p178 = por %p176, %p177
      %p180 = scmp.ne.s32.totalorder %s163, %s179
      %p181 = scmp.eq.s32.totalorder %s30, 0
      %p182 = por %p180, %p181
      %p183 = scmp.le.s32.totalorder 1, %s24
      %p184 = scmp.lt.s32.totalorder %s24, 3
      %p185 = pnand %p183, %p184
      %p186 = pneg %p185
      // Predicated region
      $region9: #{tpu_custom_call.1} parent=5 // pred_check
        _
      $region10: #{tpu_custom_call.1} parent=5 // pred_check_branch
        %188 = sbr.rel (%p185) target = $region12
      $region11: #{tpu_custom_call.1} parent=5 // pred_region
        %s189 = ssub.s32 %s24, 1
        // Predicated region
        $region13: #{tpu_custom_call.1} parent=11 // pred_check
          %p190 = pneg %p71
        $region14: #{tpu_custom_call.1} parent=11 // pred_check_branch
          %192 = sbr.rel (%p190) target = $region16
        $region15: #{tpu_custom_call.1} parent=11 // pred_region
          _
        $region16: #{tpu_custom_call.1} parent=11 // pred_fallthru
          _
      $region12: #{tpu_custom_call.1} parent=5 // pred_fallthru
        _
      %p193 = scmp.lt.s32.totalorder %s24, 2
      // Predicated region
      $region17: #{tpu_custom_call.1} parent=5 // pred_check
        %p194 = pneg %p193
      $region18: #{tpu_custom_call.1} parent=5 // pred_check_branch
        %196 = sbr.rel (%p194) target = $region20
      $region19: #{tpu_custom_call.1} parent=5 // pred_region
        // Predicated region
        $region21: #{tpu_custom_call.1} parent=19 // pred_check
          %p197 = pneg %p44
        $region22: #{tpu_custom_call.1} parent=19 // pred_check_branch
          %199 = sbr.rel (%p197) target = $region24
        $region23: #{tpu_custom_call.1} parent=19 // pred_region
          %s200 = sand.u32 %s34, 1
          %s201 = scalar_lea.sflag [#allocation3], %s200
          %s202 = sand.u32 %s34, 1
          %s203 = smul.addr %s202, 16
          %s204 = scalar_lea.vmem [#allocation2], %s203
          %s206 = ssub.s32 256, 256
          %207 = vsyncadd %s201, %s206
          %s208 = smul.addr %s24, 8
          %s209 = smul.addr %s208, 32
          %s210 = scalar_lea.hbm %s0, %s209
          %s211 = sshll.u32 %s204, 4
          %s212 = int_to_ptr.vmem [resolvable:$true] %s211
          %217 = dma.hbm_to_vmem [thread:$0]  %s210, 256, %s212, %s201, 32, 32, 2
        $region24: #{tpu_custom_call.1} parent=19 // pred_fallthru
          _
        // Predicated region
        $region25: #{tpu_custom_call.1} parent=19 // pred_check
          %p218 = pneg %p91
        $region26: #{tpu_custom_call.1} parent=19 // pred_check_branch
          %220 = sbr.rel (%p218) target = $region28
        $region27: #{tpu_custom_call.1} parent=19 // pred_region
          %s221 = sand.u32 %s81, 1
          %s222 = scalar_lea.sflag [#allocation6], %s221
          %s223 = sand.u32 %s81, 1
          %s224 = smul.addr %s223, 32
          %s225 = scalar_lea.vmem [#allocation5], %s224
          %s227 = ssub.s32 512, 512
          %228 = vsyncadd %s222, %s227
          %s229 = smul.addr %s24, 4
          %s230 = smul.addr %s229, 128
          %s231 = scalar_lea.hbm %s2, %s230
          %s232 = sshll.u32 %s225, 4
          %s233 = int_to_ptr.vmem [resolvable:$true] %s232
          %238 = dma.hbm_to_vmem [thread:$0]  %s231, 512, %s233, %s222, 128, 128, 8
        $region28: #{tpu_custom_call.1} parent=19 // pred_fallthru
          _
        // Predicated region
        $region29: #{tpu_custom_call.1} parent=19 // pred_check
          %p239 = pneg %p117
        $region30: #{tpu_custom_call.1} parent=19 // pred_check_branch
          %241 = sbr.rel (%p239) target = $region32
        $region31: #{tpu_custom_call.1} parent=19 // pred_region
          %p242 = scmp.lt.s32.totalorder %s24, 1
          %s243 = scalar_select %p242, %s24, 1
          %s244 = scalar_lea.vmem %s3, %s243
        $region32: #{tpu_custom_call.1} parent=19 // pred_fallthru
          _
      $region20: #{tpu_custom_call.1} parent=5 // pred_fallthru
        _
      %p245 = scmp.le.s32.totalorder 1, %s24
      %p246 = scmp.lt.s32.totalorder %s24, 3
      %p247 = pnand %p245, %p246
      %p248 = pneg %p247
      // Predicated region
      $region33: #{tpu_custom_call.1} parent=5 // pred_check
        _
      $region34: #{tpu_custom_call.1} parent=5 // pred_check_branch
        %250 = sbr.rel (%p247) target = $region36
      $region35: #{tpu_custom_call.1} parent=5 // pred_region
        %s251 = ssub.s32 %s24, 1
        %s252 = sand.u32 %s37, 1
        %s253 = scalar_lea.sflag [#allocation3], %s252
        %s254 = sand.u32 %s37, 1
        %s255 = smul.addr %s254, 16
        %s256 = scalar_lea.vmem [#allocation2], %s255
        // Predicated region
        $region37: #{tpu_custom_call.1} parent=35 // pred_check
          %p257 = pneg %p50
        $region38: #{tpu_custom_call.1} parent=35 // pred_check_branch
          %259 = sbr.rel (%p257) target = $region40
        $region39: #{tpu_custom_call.1} parent=35 // pred_region
          %260 = dma.done %s253, 256
        $region40: #{tpu_custom_call.1} parent=35 // pred_fallthru
          _
        %s261 = sand.u32 %s84, 1
        %s262 = scalar_lea.sflag [#allocation6], %s261
        %s263 = sand.u32 %s84, 1
        %s264 = smul.addr %s263, 32
        %s265 = scalar_lea.vmem [#allocation5], %s264
        // Predicated region
        $region41: #{tpu_custom_call.1} parent=35 // pred_check
          %p266 = pneg %p97
        $region42: #{tpu_custom_call.1} parent=35 // pred_check_branch
          %268 = sbr.rel (%p266) target = $region44
        $region43: #{tpu_custom_call.1} parent=35 // pred_region
          %269 = dma.done %s262, 512
        $region44: #{tpu_custom_call.1} parent=35 // pred_fallthru
          _
        %s270 = sand.u32 %s37, 1
        %s271 = scalar_lea.sflag [#allocation3], %s270
        %s272 = sand.u32 %s37, 1
        %s273 = smul.addr %s272, 16
        %s274 = scalar_lea.vmem [#allocation2], %s273
        %p275 = pneg %p50
        %p276 = pneg %p47
        %p277 = pneg %p71
        %p278 = pneg %p68
        %s279 = sand.u32 %s84, 1
        %s280 = scalar_lea.sflag [#allocation6], %s279
        %s281 = sand.u32 %s84, 1
        %s282 = smul.addr %s281, 32
        %s283 = scalar_lea.vmem [#allocation5], %s282
        %p284 = pneg %p97
        %p285 = pneg %p94
        %p286 = scmp.lt.s32.totalorder %s29, 1
        %s287 = scalar_select %p286, %s29, 1
        %s288 = scalar_lea.vmem %s3, %s287
        %p289 = pneg %p123
        %p290 = pneg %p120
        %p291 = pneg %p149
        %p292 = pneg %p146
        %s293 = sand.u32 %s136, 1
        %s294 = scalar_lea.sflag [#allocation4], %s293
        %s295 = sand.u32 %s136, 1
        %s296 = smul.addr %s295, 16
        %s297 = scalar_lea.vmem [#allocation7], %s296
        %p298 = pneg %p175
        %p299 = pneg %p172
        %s300 = sand.u32 %s162, 1
        %s301 = scalar_lea.sflag [#allocation9], %s300
        %s302 = sand.u32 %s162, 1
        %s303 = smul.addr %s302, 2
        %s304 = scalar_lea.vmem [#allocation8], %s303
        %p305 = scmp.lt.s32.totalorder %s29, 1
        %s306 = scalar_select %p305, %s29, 1
        %s307 = scalar_lea.vmem %s3, %s306
        %v308 = vld [vmem:[%s265] sm:$0xff]
        %v309 = vld [vmem:[%s265 + $0x8] sm:$0xff]
        %v310 = vld [vmem:[%s265 + $0x10] sm:$0xff]
        %v311 = vld [vmem:[%s265 + $0x18] sm:$0xff]
        %v312 = vld [vmem:[%s307] sm:$0x1]
        %s313 = smul.u32 %s29, 7
        %s314 = smul.u32 %s313, 2
        %s315 = scalar_lea.vmem %s256, %s314 [#allocation2]
        %v316 = vld [vmem:[%s315] sm:$0x3]
        %v318 = vlaneseq
        %v319 = vshrl.u32 %v318, 7
        %v320 = vsub.s32 0, %v319
        %v321 = vrot.slane %v312, %v320
        %vm323 = vcmask 261120
        %v325 = vsel %vm323, 0.0, 0
        %327 = vmatprep.subr.mxu0 0.0
        %328 = vmatpush1.msra.mxu0 %v308
        %329 = vmatprep.subr.mxu0 0.0
        %330 = vmatpush1.msra.mxu0 %v309
        %331 = vmatprep.subr.mxu0 0.0
        %332 = vmatpush1.msra.mxu0 %v310
        %333 = vmatprep.subr.mxu0 0.0
        %334 = vmatpush1.msra.mxu0 %v311
        %335 = vmatprep.subr.mxu0 0.0
        %336 = vmatpush1.msra.mxu0 0.0
        %337 = vmatprep.subr.mxu0 0.0
        %338 = vmatpush1.msra.mxu0 0.0
        %339 = vmatprep.subr.mxu0 0.0
        %340 = vmatpush1.msra.mxu0 0.0
        %341 = vmatprep.subr.mxu0 0.0
        %342 = vmatpush1.msra.mxu0 0.0
        %343 = vmatprep.subr.mxu0 0.0
        %344 = vmatpush1.msra.mxu0 0.0
        %345 = vmatprep.subr.mxu0 0.0
        %346 = vmatpush1.msra.mxu0 0.0
        %347 = vmatprep.subr.mxu0 0.0
        %348 = vmatpush1.msra.mxu0 0.0
        %349 = vmatprep.subr.mxu0 0.0
        %350 = vmatpush1.msra.mxu0 0.0
        %351 = vmatprep.subr.mxu0 0.0
        %352 = vmatpush1.msra.mxu0 0.0
        %353 = vmatprep.subr.mxu0 0.0
        %354 = vmatpush1.msra.mxu0 0.0
        %355 = vmatprep.subr.mxu0 0.0
        %356 = vmatpush1.msra.mxu0 0.0
        %357 = vmatprep.subr.mxu0 0.0
        %358 = vmatpush1.msra.mxu0 0.0
        %359 = vmatprep.subr.mxu0 0.0
        %360 = vmatpush1.msra.mxu0 0.0
        %361 = vmatprep.subr.mxu0 0.0
        %362 = vmatpush1.msra.mxu0 0.0
        %363 = vmatprep.subr.mxu0 0.0
        %364 = vmatpush1.msra.mxu0 0.0
        %365 = vmatprep.subr.mxu0 0.0
        %366 = vmatpush1.msra.mxu0 0.0
        %367 = vmatprep.subr.mxu0 0.0
        %368 = vmatpush1.msra.mxu0 0.0
        %369 = vmatprep.subr.mxu0 0.0
        %370 = vmatpush1.msra.mxu0 0.0
        %371 = vmatprep.subr.mxu0 0.0
        %372 = vmatpush1.msra.mxu0 0.0
        %373 = vmatprep.subr.mxu0 0.0
        %374 = vmatpush1.msra.mxu0 0.0
        %375 = vmatprep.subr.mxu0 0.0
        %376 = vmatpush1.msra.mxu0 0.0
        %377 = vmatprep.subr.mxu0 0.0
        %378 = vmatpush1.msra.mxu0 0.0
        %379 = vmatprep.subr.mxu0 0.0
        %380 = vmatpush1.msra.mxu0 0.0
        %381 = vmatprep.subr.mxu0 0.0
        %382 = vmatpush1.msra.mxu0 0.0
        %383 = vmatprep.subr.mxu0 0.0
        %384 = vmatpush1.msra.mxu0 0.0
        %385 = vmatprep.subr.mxu0 0.0
        %386 = vmatpush1.msra.mxu0 0.0
        %387 = vmatprep.subr.mxu0 0.0
        %388 = vmatpush1.msra.mxu0 0.0
        %389 = vmatprep.subr.mxu0 0.0
        %390 = vmatpush1.msra.mxu0 0.0
        %391 = vmatprep.mubr.f32.mxu0 0.0
        %392 = vmatmul.mubr.f32.gmra.mrb[0].mxu0 %v325
        %v393 = vpop.f32.mrb[0].mxu0
        %v394 = vadd.f32 %v321, %v393
        %v395 = vpop.f32.mrb[0].mxu0
        %396 = vdwg.mxu0
        %v397 = vadd.f32 %v316, %v394
        %v398 = vxor.u32 %v397, 2147483648
        %v399 = vmul.f32 %v398, 1.442695
        %v400 = vpow.pop %v399
        %v401 = vadd.f32 %v400, 1.0
        %v402 = vrcp.pop %v401
        %v403 = vmul.f32 1.0, %v402
        %405 = vrot.lane.b32.xlu0 %v394, 64
        %v406 = vpop.permute.xlu0 %405
        %v408 = vmul.f32 %v403, %v406
        %410 = vrot.lane.b32.xlu0 %v408, 64
        %v411 = vpop.permute.xlu0 %410
        %v413 = vadd.f32 %v316, %v411
        %v414 = vtanh.pop %v413
        %v415 = vsub.f32 1.0, %v403
        %417 = vrot.lane.b32.xlu0 %v414, 96
        %v418 = vpop.permute.xlu0 %417
        %v420 = vmul.f32 %v415, %v418
        %v421 = vmul.f32 %v403, 0.0
        %v422 = vadd.f32 %v420, %v421
        %s423 = scalar_lea.vmem %s1, %s314
        %v424 = vld [vmem:[%s423] sm:$0x3]
        %vm425 = vcmp.gt.f32.partialorder %v424, 0.5
        %v426 = vsel %vm425, 1, 0
        %427 = vset.pattern.permute.xlu0 0
        %428 = vperm.xlu0 %427, %v426
        %v429 = vpop.permute.xlu0 %428
        %vm430 = vcmp.eq.s32.totalorder %v429, 1
        %v431 = vsel %vm430, %v422, 0.0
        %433 = vrot.lane.b32.xlu0 %v431, 96
        %v434 = vpop.permute.xlu0 %433
        %s436 = scalar_lea.vmem %s297, %s314 [#allocation7]
        %vm437 = vcmask 254976
        %438 = vst.msk [vmem:[%s436] sm:$0x3] %vm437, %v434
        %s439 = smul.u32 %s29, 5
        %s440 = sadd.s32 %s439, 1
        %s441 = smul.u32 %s440, 2
        %s442 = scalar_lea.vmem %s256, %s441 [#allocation2]
        %v443 = vld [vmem:[%s442] sm:$0x3]
        %v444 = vsel %vm323, %v434, 0
        %446 = vmatprep.subr.mxu0 0.0
        %447 = vmatpush1.msra.mxu0 %v308
        %448 = vmatprep.subr.mxu0 0.0
        %449 = vmatpush1.msra.mxu0 %v309
        %450 = vmatprep.subr.mxu0 0.0
        %451 = vmatpush1.msra.mxu0 %v310
        %452 = vmatprep.subr.mxu0 0.0
        %453 = vmatpush1.msra.mxu0 %v311
        %454 = vmatprep.subr.mxu0 0.0
        %455 = vmatpush1.msra.mxu0 0.0
        %456 = vmatprep.subr.mxu0 0.0
        %457 = vmatpush1.msra.mxu0 0.0
        %458 = vmatprep.subr.mxu0 0.0
        %459 = vmatpush1.msra.mxu0 0.0
        %460 = vmatprep.subr.mxu0 0.0
        %461 = vmatpush1.msra.mxu0 0.0
        %462 = vmatprep.subr.mxu0 0.0
        %463 = vmatpush1.msra.mxu0 0.0
        %464 = vmatprep.subr.mxu0 0.0
        %465 = vmatpush1.msra.mxu0 0.0
        %466 = vmatprep.subr.mxu0 0.0
        %467 = vmatpush1.msra.mxu0 0.0
        %468 = vmatprep.subr.mxu0 0.0
        %469 = vmatpush1.msra.mxu0 0.0
        %470 = vmatprep.subr.mxu0 0.0
        %471 = vmatpush1.msra.mxu0 0.0
        %472 = vmatprep.subr.mxu0 0.0
        %473 = vmatpush1.msra.mxu0 0.0
        %474 = vmatprep.subr.mxu0 0.0
        %475 = vmatpush1.msra.mxu0 0.0
        %476 = vmatprep.subr.mxu0 0.0
        %477 = vmatpush1.msra.mxu0 0.0
        %478 = vmatprep.subr.mxu0 0.0
        %479 = vmatpush1.msra.mxu0 0.0
        %480 = vmatprep.subr.mxu0 0.0
        %481 = vmatpush1.msra.mxu0 0.0
        %482 = vmatprep.subr.mxu0 0.0
        %483 = vmatpush1.msra.mxu0 0.0
        %484 = vmatprep.subr.mxu0 0.0
        %485 = vmatpush1.msra.mxu0 0.0
        %486 = vmatprep.subr.mxu0 0.0
        %487 = vmatpush1.msra.mxu0 0.0
        %488 = vmatprep.subr.mxu0 0.0
        %489 = vmatpush1.msra.mxu0 0.0
        %490 = vmatprep.subr.mxu0 0.0
        %491 = vmatpush1.msra.mxu0 0.0
        %492 = vmatprep.subr.mxu0 0.0
        %493 = vmatpush1.msra.mxu0 0.0
        %494 = vmatprep.subr.mxu0 0.0
        %495 = vmatpush1.msra.mxu0 0.0
        %496 = vmatprep.subr.mxu0 0.0
        %497 = vmatpush1.msra.mxu0 0.0
        %498 = vmatprep.subr.mxu0 0.0
        %499 = vmatpush1.msra.mxu0 0.0
        %500 = vmatprep.subr.mxu0 0.0
        %501 = vmatpush1.msra.mxu0 0.0
        %502 = vmatprep.subr.mxu0 0.0
        %503 = vmatpush1.msra.mxu0 0.0
        %504 = vmatprep.subr.mxu0 0.0
        %505 = vmatpush1.msra.mxu0 0.0
        %506 = vmatprep.subr.mxu0 0.0
        %507 = vmatpush1.msra.mxu0 0.0
        %508 = vmatprep.subr.mxu0 0.0
        %509 = vmatpush1.msra.mxu0 0.0
        %510 = vmatprep.mubr.f32.mxu0 0.0
        %511 = vmatmul.mubr.f32.gmra.mrb[0].mxu0 %v444
        %v512 = vpop.f32.mrb[0].mxu0
        %v513 = vadd.f32 %v321, %v512
        %v514 = vpop.f32.mrb[0].mxu0
        %515 = vdwg.mxu0
        %v516 = vadd.f32 %v443, %v513
        %v517 = vxor.u32 %v516, 2147483648
        %v518 = vmul.f32 %v517, 1.442695
        %v519 = vpow.pop %v518
        %v520 = vadd.f32 %v519, 1.0
        %v521 = vrcp.pop %v520
        %v522 = vmul.f32 1.0, %v521
        %524 = vrot.lane.b32.xlu0 %v513, 64
        %v525 = vpop.permute.xlu0 %524
        %v527 = vmul.f32 %v522, %v525
        %529 = vrot.lane.b32.xlu0 %v527, 64
        %v530 = vpop.permute.xlu0 %529
        %v532 = vadd.f32 %v443, %v530
        %v533 = vtanh.pop %v532
        %v534 = vsub.f32 1.0, %v522
        %536 = vrot.lane.b32.xlu0 %v533, 96
        %v537 = vpop.permute.xlu0 %536
        %v539 = vmul.f32 %v534, %v537
        %v540 = vmul.f32 %v522, %v431
        %v541 = vadd.f32 %v539, %v540
        %s542 = scalar_lea.vmem %s1, %s441
        %v543 = vld [vmem:[%s542] sm:$0x3]
        %vm544 = vcmp.gt.f32.partialorder %v543, 0.5
        %v545 = vsel %vm544, 1, 0
        %546 = vset.pattern.permute.xlu0 0
        %547 = vperm.xlu0 %546, %v545
        %v548 = vpop.permute.xlu0 %547
        %vm549 = vcmp.eq.s32.totalorder %v548, 1
        %v550 = vsel %vm549, %v541, %v431
        %v551 = vsel %vm549, %v541, 0.0
        %553 = vrot.lane.b32.xlu0 %v551, 96
        %v554 = vpop.permute.xlu0 %553
        %s556 = scalar_lea.vmem %s297, %s441 [#allocation7]
        %557 = vst.msk [vmem:[%s556] sm:$0x3] %vm437, %v554
        %s558 = smul.u32 %s29, 3
        %s559 = sadd.s32 %s558, 2
        %s560 = smul.u32 %s559, 2
        %s561 = scalar_lea.vmem %s256, %s560 [#allocation2]
        %v562 = vld [vmem:[%s561] sm:$0x3]
        %564 = vrot.lane.b32.xlu0 %v550, 96
        %v565 = vpop.permute.xlu0 %564
        %v566 = vsel %vm323, %v565, 0
        %568 = vmatprep.subr.mxu0 0.0
        %569 = vmatpush1.msra.mxu0 %v308
        %570 = vmatprep.subr.mxu0 0.0
        %571 = vmatpush1.msra.mxu0 %v309
        %572 = vmatprep.subr.mxu0 0.0
        %573 = vmatpush1.msra.mxu0 %v310
        %574 = vmatprep.subr.mxu0 0.0
        %575 = vmatpush1.msra.mxu0 %v311
        %576 = vmatprep.subr.mxu0 0.0
        %577 = vmatpush1.msra.mxu0 0.0
        %578 = vmatprep.subr.mxu0 0.0
        %579 = vmatpush1.msra.mxu0 0.0
        %580 = vmatprep.subr.mxu0 0.0
        %581 = vmatpush1.msra.mxu0 0.0
        %582 = vmatprep.subr.mxu0 0.0
        %583 = vmatpush1.msra.mxu0 0.0
        %584 = vmatprep.subr.mxu0 0.0
        %585 = vmatpush1.msra.mxu0 0.0
        %586 = vmatprep.subr.mxu0 0.0
        %587 = vmatpush1.msra.mxu0 0.0
        %588 = vmatprep.subr.mxu0 0.0
        %589 = vmatpush1.msra.mxu0 0.0
        %590 = vmatprep.subr.mxu0 0.0
        %591 = vmatpush1.msra.mxu0 0.0
        %592 = vmatprep.subr.mxu0 0.0
        %593 = vmatpush1.msra.mxu0 0.0
        %594 = vmatprep.subr.mxu0 0.0
        %595 = vmatpush1.msra.mxu0 0.0
        %596 = vmatprep.subr.mxu0 0.0
        %597 = vmatpush1.msra.mxu0 0.0
        %598 = vmatprep.subr.mxu0 0.0
        %599 = vmatpush1.msra.mxu0 0.0
        %600 = vmatprep.subr.mxu0 0.0
        %601 = vmatpush1.msra.mxu0 0.0
        %602 = vmatprep.subr.mxu0 0.0
        %603 = vmatpush1.msra.mxu0 0.0
        %604 = vmatprep.subr.mxu0 0.0
        %605 = vmatpush1.msra.mxu0 0.0
        %606 = vmatprep.subr.mxu0 0.0
        %607 = vmatpush1.msra.mxu0 0.0
        %608 = vmatprep.subr.mxu0 0.0
        %609 = vmatpush1.msra.mxu0 0.0
        %610 = vmatprep.subr.mxu0 0.0
        %611 = vmatpush1.msra.mxu0 0.0
        %612 = vmatprep.subr.mxu0 0.0
        %613 = vmatpush1.msra.mxu0 0.0
        %614 = vmatprep.subr.mxu0 0.0
        %615 = vmatpush1.msra.mxu0 0.0
        %616 = vmatprep.subr.mxu0 0.0
        %617 = vmatpush1.msra.mxu0 0.0
        %618 = vmatprep.subr.mxu0 0.0
        %619 = vmatpush1.msra.mxu0 0.0
        %620 = vmatprep.subr.mxu0 0.0
        %621 = vmatpush1.msra.mxu0 0.0
        %622 = vmatprep.subr.mxu0 0.0
        %623 = vmatpush1.msra.mxu0 0.0
        %624 = vmatprep.subr.mxu0 0.0
        %625 = vmatpush1.msra.mxu0 0.0
        %626 = vmatprep.subr.mxu0 0.0
        %627 = vmatpush1.msra.mxu0 0.0
        %628 = vmatprep.subr.mxu0 0.0
        %629 = vmatpush1.msra.mxu0 0.0
        %630 = vmatprep.subr.mxu0 0.0
        %631 = vmatpush1.msra.mxu0 0.0
        %632 = vmatprep.mubr.f32.mxu0 0.0
        %633 = vmatmul.mubr.f32.gmra.mrb[0].mxu0 %v566
        %v634 = vpop.f32.mrb[0].mxu0
        %v635 = vadd.f32 %v321, %v634
        %v636 = vpop.f32.mrb[0].mxu0
        %637 = vdwg.mxu0
        %v638 = vadd.f32 %v562, %v635
        %v639 = vxor.u32 %v638, 2147483648
        %v640 = vmul.f32 %v639, 1.442695
        %v641 = vpow.pop %v640
        %v642 = vadd.f32 %v641, 1.0
        %v643 = vrcp.pop %v642
        %v644 = vmul.f32 1.0, %v643
        %646 = vrot.lane.b32.xlu0 %v635, 64
        %v647 = vpop.permute.xlu0 %646
        %v649 = vmul.f32 %v644, %v647
        %651 = vrot.lane.b32.xlu0 %v649, 64
        %v652 = vpop.permute.xlu0 %651
        %v654 = vadd.f32 %v562, %v652
        %v655 = vtanh.pop %v654
        %v656 = vsub.f32 1.0, %v644
        %658 = vrot.lane.b32.xlu0 %v655, 96
        %v659 = vpop.permute.xlu0 %658
        %v661 = vmul.f32 %v656, %v659
        %v662 = vmul.f32 %v644, %v550
        %v663 = vadd.f32 %v661, %v662
        %s664 = scalar_lea.vmem %s1, %s560
        %v665 = vld [vmem:[%s664] sm:$0x3]
        %vm666 = vcmp.gt.f32.partialorder %v665, 0.5
        %v667 = vsel %vm666, 1, 0
        %668 = vset.pattern.permute.xlu0 0
        %669 = vperm.xlu0 %668, %v667
        %v670 = vpop.permute.xlu0 %669
        %vm671 = vcmp.eq.s32.totalorder %v670, 1
        %v672 = vsel %vm671, %v663, %v550
        %v673 = vsel %vm671, %v663, 0.0
        %675 = vrot.lane.b32.xlu0 %v673, 96
        %v676 = vpop.permute.xlu0 %675
        %s678 = scalar_lea.vmem %s297, %s560 [#allocation7]
        %679 = vst.msk [vmem:[%s678] sm:$0x3] %vm437, %v676
        %s680 = sadd.s32 %s29, 3
        %s681 = smul.u32 %s680, 2
        %s682 = scalar_lea.vmem %s256, %s681 [#allocation2]
        %v683 = vld [vmem:[%s682] sm:$0x3]
        %685 = vrot.lane.b32.xlu0 %v672, 96
        %v686 = vpop.permute.xlu0 %685
        %v687 = vsel %vm323, %v686, 0
        %689 = vmatprep.subr.mxu0 0.0
        %690 = vmatpush1.msra.mxu0 %v308
        %691 = vmatprep.subr.mxu0 0.0
        %692 = vmatpush1.msra.mxu0 %v309
        %693 = vmatprep.subr.mxu0 0.0
        %694 = vmatpush1.msra.mxu0 %v310
        %695 = vmatprep.subr.mxu0 0.0
        %696 = vmatpush1.msra.mxu0 %v311
        %697 = vmatprep.subr.mxu0 0.0
        %698 = vmatpush1.msra.mxu0 0.0
        %699 = vmatprep.subr.mxu0 0.0
        %700 = vmatpush1.msra.mxu0 0.0
        %701 = vmatprep.subr.mxu0 0.0
        %702 = vmatpush1.msra.mxu0 0.0
        %703 = vmatprep.subr.mxu0 0.0
        %704 = vmatpush1.msra.mxu0 0.0
        %705 = vmatprep.subr.mxu0 0.0
        %706 = vmatpush1.msra.mxu0 0.0
        %707 = vmatprep.subr.mxu0 0.0
        %708 = vmatpush1.msra.mxu0 0.0
        %709 = vmatprep.subr.mxu0 0.0
        %710 = vmatpush1.msra.mxu0 0.0
        %711 = vmatprep.subr.mxu0 0.0
        %712 = vmatpush1.msra.mxu0 0.0
        %713 = vmatprep.subr.mxu0 0.0
        %714 = vmatpush1.msra.mxu0 0.0
        %715 = vmatprep.subr.mxu0 0.0
        %716 = vmatpush1.msra.mxu0 0.0
        %717 = vmatprep.subr.mxu0 0.0
        %718 = vmatpush1.msra.mxu0 0.0
        %719 = vmatprep.subr.mxu0 0.0
        %720 = vmatpush1.msra.mxu0 0.0
        %721 = vmatprep.subr.mxu0 0.0
        %722 = vmatpush1.msra.mxu0 0.0
        %723 = vmatprep.subr.mxu0 0.0
        %724 = vmatpush1.msra.mxu0 0.0
        %725 = vmatprep.subr.mxu0 0.0
        %726 = vmatpush1.msra.mxu0 0.0
        %727 = vmatprep.subr.mxu0 0.0
        %728 = vmatpush1.msra.mxu0 0.0
        %729 = vmatprep.subr.mxu0 0.0
        %730 = vmatpush1.msra.mxu0 0.0
        %731 = vmatprep.subr.mxu0 0.0
        %732 = vmatpush1.msra.mxu0 0.0
        %733 = vmatprep.subr.mxu0 0.0
        %734 = vmatpush1.msra.mxu0 0.0
        %735 = vmatprep.subr.mxu0 0.0
        %736 = vmatpush1.msra.mxu0 0.0
        %737 = vmatprep.subr.mxu0 0.0
        %738 = vmatpush1.msra.mxu0 0.0
        %739 = vmatprep.subr.mxu0 0.0
        %740 = vmatpush1.msra.mxu0 0.0
        %741 = vmatprep.subr.mxu0 0.0
        %742 = vmatpush1.msra.mxu0 0.0
        %743 = vmatprep.subr.mxu0 0.0
        %744 = vmatpush1.msra.mxu0 0.0
        %745 = vmatprep.subr.mxu0 0.0
        %746 = vmatpush1.msra.mxu0 0.0
        %747 = vmatprep.subr.mxu0 0.0
        %748 = vmatpush1.msra.mxu0 0.0
        %749 = vmatprep.subr.mxu0 0.0
        %750 = vmatpush1.msra.mxu0 0.0
        %751 = vmatprep.subr.mxu0 0.0
        %752 = vmatpush1.msra.mxu0 0.0
        %753 = vmatprep.mubr.f32.mxu0 0.0
        %754 = vmatmul.mubr.f32.gmra.mrb[0].mxu0 %v687
        %v755 = vpop.f32.mrb[0].mxu0
        %v756 = vadd.f32 %v321, %v755
        %v757 = vpop.f32.mrb[0].mxu0
        %758 = vdwg.mxu0
        %v759 = vadd.f32 %v683, %v756
        %v760 = vxor.u32 %v759, 2147483648
        %v761 = vmul.f32 %v760, 1.442695
        %v762 = vpow.pop %v761
        %v763 = vadd.f32 %v762, 1.0
        %v764 = vrcp.pop %v763
        %v765 = vmul.f32 1.0, %v764
        %767 = vrot.lane.b32.xlu0 %v756, 64
        %v768 = vpop.permute.xlu0 %767
        %v770 = vmul.f32 %v765, %v768
        %772 = vrot.lane.b32.xlu0 %v770, 64
        %v773 = vpop.permute.xlu0 %772
        %v775 = vadd.f32 %v683, %v773
        %v776 = vtanh.pop %v775
        %v777 = vsub.f32 1.0, %v765
        %779 = vrot.lane.b32.xlu0 %v776, 96
        %v780 = vpop.permute.xlu0 %779
        %v782 = vmul.f32 %v777, %v780
        %v783 = vmul.f32 %v765, %v672
        %v784 = vadd.f32 %v782, %v783
        %s785 = scalar_lea.vmem %s1, %s681
        %v786 = vld [vmem:[%s785] sm:$0x3]
        %vm787 = vcmp.gt.f32.partialorder %v786, 0.5
        %v788 = vsel %vm787, 1, 0
        %789 = vset.pattern.permute.xlu0 0
        %790 = vperm.xlu0 %789, %v788
        %v791 = vpop.permute.xlu0 %790
        %vm792 = vcmp.eq.s32.totalorder %v791, 1
        %v793 = vsel %vm792, %v784, %v672
        %v794 = vsel %vm792, %v784, 0.0
        %796 = vrot.lane.b32.xlu0 %v794, 96
        %v797 = vpop.permute.xlu0 %796
        %s799 = scalar_lea.vmem %s297, %s681 [#allocation7]
        %800 = vst.msk [vmem:[%s799] sm:$0x3] %vm437, %v797
        %s801 = ssub.s32 4, %s29
        %s802 = smul.u32 %s801, 2
        %s803 = scalar_lea.vmem %s256, %s802 [#allocation2]
        %v804 = vld [vmem:[%s803] sm:$0x3]
        %806 = vrot.lane.b32.xlu0 %v793, 96
        %v807 = vpop.permute.xlu0 %806
        %v808 = vsel %vm323, %v807, 0
        %810 = vmatprep.subr.mxu0 0.0
        %811 = vmatpush1.msra.mxu0 %v308
        %812 = vmatprep.subr.mxu0 0.0
        %813 = vmatpush1.msra.mxu0 %v309
        %814 = vmatprep.subr.mxu0 0.0
        %815 = vmatpush1.msra.mxu0 %v310
        %816 = vmatprep.subr.mxu0 0.0
        %817 = vmatpush1.msra.mxu0 %v311
        %818 = vmatprep.subr.mxu0 0.0
        %819 = vmatpush1.msra.mxu0 0.0
        %820 = vmatprep.subr.mxu0 0.0
        %821 = vmatpush1.msra.mxu0 0.0
        %822 = vmatprep.subr.mxu0 0.0
        %823 = vmatpush1.msra.mxu0 0.0
        %824 = vmatprep.subr.mxu0 0.0
        %825 = vmatpush1.msra.mxu0 0.0
        %826 = vmatprep.subr.mxu0 0.0
        %827 = vmatpush1.msra.mxu0 0.0
        %828 = vmatprep.subr.mxu0 0.0
        %829 = vmatpush1.msra.mxu0 0.0
        %830 = vmatprep.subr.mxu0 0.0
        %831 = vmatpush1.msra.mxu0 0.0
        %832 = vmatprep.subr.mxu0 0.0
        %833 = vmatpush1.msra.mxu0 0.0
        %834 = vmatprep.subr.mxu0 0.0
        %835 = vmatpush1.msra.mxu0 0.0
        %836 = vmatprep.subr.mxu0 0.0
        %837 = vmatpush1.msra.mxu0 0.0
        %838 = vmatprep.subr.mxu0 0.0
        %839 = vmatpush1.msra.mxu0 0.0
        %840 = vmatprep.subr.mxu0 0.0
        %841 = vmatpush1.msra.mxu0 0.0
        %842 = vmatprep.subr.mxu0 0.0
        %843 = vmatpush1.msra.mxu0 0.0
        %844 = vmatprep.subr.mxu0 0.0
        %845 = vmatpush1.msra.mxu0 0.0
        %846 = vmatprep.subr.mxu0 0.0
        %847 = vmatpush1.msra.mxu0 0.0
        %848 = vmatprep.subr.mxu0 0.0
        %849 = vmatpush1.msra.mxu0 0.0
        %850 = vmatprep.subr.mxu0 0.0
        %851 = vmatpush1.msra.mxu0 0.0
        %852 = vmatprep.subr.mxu0 0.0
        %853 = vmatpush1.msra.mxu0 0.0
        %854 = vmatprep.subr.mxu0 0.0
        %855 = vmatpush1.msra.mxu0 0.0
        %856 = vmatprep.subr.mxu0 0.0
        %857 = vmatpush1.msra.mxu0 0.0
        %858 = vmatprep.subr.mxu0 0.0
        %859 = vmatpush1.msra.mxu0 0.0
        %860 = vmatprep.subr.mxu0 0.0
        %861 = vmatpush1.msra.mxu0 0.0
        %862 = vmatprep.subr.mxu0 0.0
        %863 = vmatpush1.msra.mxu0 0.0
        %864 = vmatprep.subr.mxu0 0.0
        %865 = vmatpush1.msra.mxu0 0.0
        %866 = vmatprep.subr.mxu0 0.0
        %867 = vmatpush1.msra.mxu0 0.0
        %868 = vmatprep.subr.mxu0 0.0
        %869 = vmatpush1.msra.mxu0 0.0
        %870 = vmatprep.subr.mxu0 0.0
        %871 = vmatpush1.msra.mxu0 0.0
        %872 = vmatprep.subr.mxu0 0.0
        %873 = vmatpush1.msra.mxu0 0.0
        %874 = vmatprep.mubr.f32.mxu0 0.0
        %875 = vmatmul.mubr.f32.gmra.mrb[0].mxu0 %v808
        %v876 = vpop.f32.mrb[0].mxu0
        %v877 = vadd.f32 %v321, %v876
        %v878 = vpop.f32.mrb[0].mxu0
        %879 = vdwg.mxu0
        %v880 = vadd.f32 %v804, %v877
        %v881 = vxor.u32 %v880, 2147483648
        %v882 = vmul.f32 %v881, 1.442695
        %v883 = vpow.pop %v882
        %v884 = vadd.f32 %v883, 1.0
        %v885 = vrcp.pop %v884
        %v886 = vmul.f32 1.0, %v885
        %888 = vrot.lane.b32.xlu0 %v877, 64
        %v889 = vpop.permute.xlu0 %888
        %v891 = vmul.f32 %v886, %v889
        %893 = vrot.lane.b32.xlu0 %v891, 64
        %v894 = vpop.permute.xlu0 %893
        %v896 = vadd.f32 %v804, %v894
        %v897 = vtanh.pop %v896
        %v898 = vsub.f32 1.0, %v886
        %900 = vrot.lane.b32.xlu0 %v897, 96
        %v901 = vpop.permute.xlu0 %900
        %v903 = vmul.f32 %v898, %v901
        %v904 = vmul.f32 %v886, %v793
        %v905 = vadd.f32 %v903, %v904
        %s906 = scalar_lea.vmem %s1, %s802
        %v907 = vld [vmem:[%s906] sm:$0x3]
        %vm908 = vcmp.gt.f32.partialorder %v907, 0.5
        %v909 = vsel %vm908, 1, 0
        %910 = vset.pattern.permute.xlu0 0
        %911 = vperm.xlu0 %910, %v909
        %v912 = vpop.permute.xlu0 %911
        %vm913 = vcmp.eq.s32.totalorder %v912, 1
        %v914 = vsel %vm913, %v905, %v793
        %v915 = vsel %vm913, %v905, 0.0
        %917 = vrot.lane.b32.xlu0 %v915, 96
        %v918 = vpop.permute.xlu0 %917
        %s920 = scalar_lea.vmem %s297, %s802 [#allocation7]
        %921 = vst.msk [vmem:[%s920] sm:$0x3] %vm437, %v918
        %s922 = smul.u32 %s29, 4294967293
        %s923 = sadd.s32 %s922, 5
        %s924 = smul.u32 %s923, 2
        %s925 = scalar_lea.vmem %s256, %s924 [#allocation2]
        %v926 = vld [vmem:[%s925] sm:$0x3]
        %928 = vrot.lane.b32.xlu0 %v914, 96
        %v929 = vpop.permute.xlu0 %928
        %v930 = vsel %vm323, %v929, 0
        %932 = vmatprep.subr.mxu0 0.0
        %933 = vmatpush1.msra.mxu0 %v308
        %934 = vmatprep.subr.mxu0 0.0
        %935 = vmatpush1.msra.mxu0 %v309
        %936 = vmatprep.subr.mxu0 0.0
        %937 = vmatpush1.msra.mxu0 %v310
        %938 = vmatprep.subr.mxu0 0.0
        %939 = vmatpush1.msra.mxu0 %v311
        %940 = vmatprep.subr.mxu0 0.0
        %941 = vmatpush1.msra.mxu0 0.0
        %942 = vmatprep.subr.mxu0 0.0
        %943 = vmatpush1.msra.mxu0 0.0
        %944 = vmatprep.subr.mxu0 0.0
        %945 = vmatpush1.msra.mxu0 0.0
        %946 = vmatprep.subr.mxu0 0.0
        %947 = vmatpush1.msra.mxu0 0.0
        %948 = vmatprep.subr.mxu0 0.0
        %949 = vmatpush1.msra.mxu0 0.0
        %950 = vmatprep.subr.mxu0 0.0
        %951 = vmatpush1.msra.mxu0 0.0
        %952 = vmatprep.subr.mxu0 0.0
        %953 = vmatpush1.msra.mxu0 0.0
        %954 = vmatprep.subr.mxu0 0.0
        %955 = vmatpush1.msra.mxu0 0.0
        %956 = vmatprep.subr.mxu0 0.0
        %957 = vmatpush1.msra.mxu0 0.0
        %958 = vmatprep.subr.mxu0 0.0
        %959 = vmatpush1.msra.mxu0 0.0
        %960 = vmatprep.subr.mxu0 0.0
        %961 = vmatpush1.msra.mxu0 0.0
        %962 = vmatprep.subr.mxu0 0.0
        %963 = vmatpush1.msra.mxu0 0.0
        %964 = vmatprep.subr.mxu0 0.0
        %965 = vmatpush1.msra.mxu0 0.0
        %966 = vmatprep.subr.mxu0 0.0
        %967 = vmatpush1.msra.mxu0 0.0
        %968 = vmatprep.subr.mxu0 0.0
        %969 = vmatpush1.msra.mxu0 0.0
        %970 = vmatprep.subr.mxu0 0.0
        %971 = vmatpush1.msra.mxu0 0.0
        %972 = vmatprep.subr.mxu0 0.0
        %973 = vmatpush1.msra.mxu0 0.0
        %974 = vmatprep.subr.mxu0 0.0
        %975 = vmatpush1.msra.mxu0 0.0
        %976 = vmatprep.subr.mxu0 0.0
        %977 = vmatpush1.msra.mxu0 0.0
        %978 = vmatprep.subr.mxu0 0.0
        %979 = vmatpush1.msra.mxu0 0.0
        %980 = vmatprep.subr.mxu0 0.0
        %981 = vmatpush1.msra.mxu0 0.0
        %982 = vmatprep.subr.mxu0 0.0
        %983 = vmatpush1.msra.mxu0 0.0
        %984 = vmatprep.subr.mxu0 0.0
        %985 = vmatpush1.msra.mxu0 0.0
        %986 = vmatprep.subr.mxu0 0.0
        %987 = vmatpush1.msra.mxu0 0.0
        %988 = vmatprep.subr.mxu0 0.0
        %989 = vmatpush1.msra.mxu0 0.0
        %990 = vmatprep.subr.mxu0 0.0
        %991 = vmatpush1.msra.mxu0 0.0
        %992 = vmatprep.subr.mxu0 0.0
        %993 = vmatpush1.msra.mxu0 0.0
        %994 = vmatprep.subr.mxu0 0.0
        %995 = vmatpush1.msra.mxu0 0.0
        %996 = vmatprep.mubr.f32.mxu0 0.0
        %997 = vmatmul.mubr.f32.gmra.mrb[0].mxu0 %v930
        %v998 = vpop.f32.mrb[0].mxu0
        %v999 = vadd.f32 %v321, %v998
        %v1000 = vpop.f32.mrb[0].mxu0
        %1001 = vdwg.mxu0
        %v1002 = vadd.f32 %v926, %v999
        %v1003 = vxor.u32 %v1002, 2147483648
        %v1004 = vmul.f32 %v1003, 1.442695
        %v1005 = vpow.pop %v1004
        %v1006 = vadd.f32 %v1005, 1.0
        %v1007 = vrcp.pop %v1006
        %v1008 = vmul.f32 1.0, %v1007
        %1010 = vrot.lane.b32.xlu0 %v999, 64
        %v1011 = vpop.permute.xlu0 %1010
        %v1013 = vmul.f32 %v1008, %v1011
        %1015 = vrot.lane.b32.xlu0 %v1013, 64
        %v1016 = vpop.permute.xlu0 %1015
        %v1018 = vadd.f32 %v926, %v1016
        %v1019 = vtanh.pop %v1018
        %v1020 = vsub.f32 1.0, %v1008
        %1022 = vrot.lane.b32.xlu0 %v1019, 96
        %v1023 = vpop.permute.xlu0 %1022
        %v1025 = vmul.f32 %v1020, %v1023
        %v1026 = vmul.f32 %v1008, %v914
        %v1027 = vadd.f32 %v1025, %v1026
        %s1028 = scalar_lea.vmem %s1, %s924
        %v1029 = vld [vmem:[%s1028] sm:$0x3]
        %vm1030 = vcmp.gt.f32.partialorder %v1029, 0.5
        %v1031 = vsel %vm1030, 1, 0
        %1032 = vset.pattern.permute.xlu0 0
        %1033 = vperm.xlu0 %1032, %v1031
        %v1034 = vpop.permute.xlu0 %1033
        %vm1035 = vcmp.eq.s32.totalorder %v1034, 1
        %v1036 = vsel %vm1035, %v1027, %v914
        %v1037 = vsel %vm1035, %v1027, 0.0
        %1039 = vrot.lane.b32.xlu0 %v1037, 96
        %v1040 = vpop.permute.xlu0 %1039
        %s1042 = scalar_lea.vmem %s297, %s924 [#allocation7]
        %1043 = vst.msk [vmem:[%s1042] sm:$0x3] %vm437, %v1040
        %s1044 = smul.u32 %s29, 4294967291
        %s1045 = sadd.s32 %s1044, 6
        %s1046 = smul.u32 %s1045, 2
        %s1047 = scalar_lea.vmem %s256, %s1046 [#allocation2]
        %v1048 = vld [vmem:[%s1047] sm:$0x3]
        %1050 = vrot.lane.b32.xlu0 %v1036, 96
        %v1051 = vpop.permute.xlu0 %1050
        %v1052 = vsel %vm323, %v1051, 0
        %1054 = vmatprep.subr.mxu0 0.0
        %1055 = vmatpush1.msra.mxu0 %v308
        %1056 = vmatprep.subr.mxu0 0.0
        %1057 = vmatpush1.msra.mxu0 %v309
        %1058 = vmatprep.subr.mxu0 0.0
        %1059 = vmatpush1.msra.mxu0 %v310
        %1060 = vmatprep.subr.mxu0 0.0
        %1061 = vmatpush1.msra.mxu0 %v311
        %1062 = vmatprep.subr.mxu0 0.0
        %1063 = vmatpush1.msra.mxu0 0.0
        %1064 = vmatprep.subr.mxu0 0.0
        %1065 = vmatpush1.msra.mxu0 0.0
        %1066 = vmatprep.subr.mxu0 0.0
        %1067 = vmatpush1.msra.mxu0 0.0
        %1068 = vmatprep.subr.mxu0 0.0
        %1069 = vmatpush1.msra.mxu0 0.0
        %1070 = vmatprep.subr.mxu0 0.0
        %1071 = vmatpush1.msra.mxu0 0.0
        %1072 = vmatprep.subr.mxu0 0.0
        %1073 = vmatpush1.msra.mxu0 0.0
        %1074 = vmatprep.subr.mxu0 0.0
        %1075 = vmatpush1.msra.mxu0 0.0
        %1076 = vmatprep.subr.mxu0 0.0
        %1077 = vmatpush1.msra.mxu0 0.0
        %1078 = vmatprep.subr.mxu0 0.0
        %1079 = vmatpush1.msra.mxu0 0.0
        %1080 = vmatprep.subr.mxu0 0.0
        %1081 = vmatpush1.msra.mxu0 0.0
        %1082 = vmatprep.subr.mxu0 0.0
        %1083 = vmatpush1.msra.mxu0 0.0
        %1084 = vmatprep.subr.mxu0 0.0
        %1085 = vmatpush1.msra.mxu0 0.0
        %1086 = vmatprep.subr.mxu0 0.0
        %1087 = vmatpush1.msra.mxu0 0.0
        %1088 = vmatprep.subr.mxu0 0.0
        %1089 = vmatpush1.msra.mxu0 0.0
        %1090 = vmatprep.subr.mxu0 0.0
        %1091 = vmatpush1.msra.mxu0 0.0
        %1092 = vmatprep.subr.mxu0 0.0
        %1093 = vmatpush1.msra.mxu0 0.0
        %1094 = vmatprep.subr.mxu0 0.0
        %1095 = vmatpush1.msra.mxu0 0.0
        %1096 = vmatprep.subr.mxu0 0.0
        %1097 = vmatpush1.msra.mxu0 0.0
        %1098 = vmatprep.subr.mxu0 0.0
        %1099 = vmatpush1.msra.mxu0 0.0
        %1100 = vmatprep.subr.mxu0 0.0
        %1101 = vmatpush1.msra.mxu0 0.0
        %1102 = vmatprep.subr.mxu0 0.0
        %1103 = vmatpush1.msra.mxu0 0.0
        %1104 = vmatprep.subr.mxu0 0.0
        %1105 = vmatpush1.msra.mxu0 0.0
        %1106 = vmatprep.subr.mxu0 0.0
        %1107 = vmatpush1.msra.mxu0 0.0
        %1108 = vmatprep.subr.mxu0 0.0
        %1109 = vmatpush1.msra.mxu0 0.0
        %1110 = vmatprep.subr.mxu0 0.0
        %1111 = vmatpush1.msra.mxu0 0.0
        %1112 = vmatprep.subr.mxu0 0.0
        %1113 = vmatpush1.msra.mxu0 0.0
        %1114 = vmatprep.subr.mxu0 0.0
        %1115 = vmatpush1.msra.mxu0 0.0
        %1116 = vmatprep.subr.mxu0 0.0
        %1117 = vmatpush1.msra.mxu0 0.0
        %1118 = vmatprep.mubr.f32.mxu0 0.0
        %1119 = vmatmul.mubr.f32.gmra.mrb[0].mxu0 %v1052
        %v1120 = vpop.f32.mrb[0].mxu0
        %v1121 = vadd.f32 %v321, %v1120
        %v1122 = vpop.f32.mrb[0].mxu0
        %1123 = vdwg.mxu0
        %v1124 = vadd.f32 %v1048, %v1121
        %v1125 = vxor.u32 %v1124, 2147483648
        %v1126 = vmul.f32 %v1125, 1.442695
        %v1127 = vpow.pop %v1126
        %v1128 = vadd.f32 %v1127, 1.0
        %v1129 = vrcp.pop %v1128
        %v1130 = vmul.f32 1.0, %v1129
        %1132 = vrot.lane.b32.xlu0 %v1121, 64
        %v1133 = vpop.permute.xlu0 %1132
        %v1135 = vmul.f32 %v1130, %v1133
        %1137 = vrot.lane.b32.xlu0 %v1135, 64
        %v1138 = vpop.permute.xlu0 %1137
        %v1140 = vadd.f32 %v1048, %v1138
        %v1141 = vtanh.pop %v1140
        %v1142 = vsub.f32 1.0, %v1130
        %1144 = vrot.lane.b32.xlu0 %v1141, 96
        %v1145 = vpop.permute.xlu0 %1144
        %v1147 = vmul.f32 %v1142, %v1145
        %v1148 = vmul.f32 %v1130, %v1036
        %v1149 = vadd.f32 %v1147, %v1148
        %s1150 = scalar_lea.vmem %s1, %s1046
        %v1151 = vld [vmem:[%s1150] sm:$0x3]
        %vm1152 = vcmp.gt.f32.partialorder %v1151, 0.5
        %v1153 = vsel %vm1152, 1, 0
        %1154 = vset.pattern.permute.xlu0 0
        %1155 = vperm.xlu0 %1154, %v1153
        %v1156 = vpop.permute.xlu0 %1155
        %vm1157 = vcmp.eq.s32.totalorder %v1156, 1
        %v1158 = vsel %vm1157, %v1149, %v1036
        %v1159 = vsel %vm1157, %v1149, 0.0
        %1161 = vrot.lane.b32.xlu0 %v1159, 96
        %v1162 = vpop.permute.xlu0 %1161
        %s1164 = scalar_lea.vmem %s297, %s1046 [#allocation7]
        %1165 = vst.msk [vmem:[%s1164] sm:$0x3] %vm437, %v1162
        %s1166 = smul.u32 %s29, 4294967289
        %s1167 = sadd.s32 %s1166, 7
        %s1168 = smul.u32 %s1167, 2
        %s1169 = scalar_lea.vmem %s256, %s1168 [#allocation2]
        %v1170 = vld [vmem:[%s1169] sm:$0x3]
        %1172 = vrot.lane.b32.xlu0 %v1158, 96
        %v1173 = vpop.permute.xlu0 %1172
        %v1174 = vsel %vm323, %v1173, 0
        %1176 = vmatprep.subr.mxu0 0.0
        %1177 = vmatpush1.msra.mxu0 %v308
        %1178 = vmatprep.subr.mxu0 0.0
        %1179 = vmatpush1.msra.mxu0 %v309
        %1180 = vmatprep.subr.mxu0 0.0
        %1181 = vmatpush1.msra.mxu0 %v310
        %1182 = vmatprep.subr.mxu0 0.0
        %1183 = vmatpush1.msra.mxu0 %v311
        %1184 = vmatprep.subr.mxu0 0.0
        %1185 = vmatpush1.msra.mxu0 0.0
        %1186 = vmatprep.subr.mxu0 0.0
        %1187 = vmatpush1.msra.mxu0 0.0
        %1188 = vmatprep.subr.mxu0 0.0
        %1189 = vmatpush1.msra.mxu0 0.0
        %1190 = vmatprep.subr.mxu0 0.0
        %1191 = vmatpush1.msra.mxu0 0.0
        %1192 = vmatprep.subr.mxu0 0.0
        %1193 = vmatpush1.msra.mxu0 0.0
        %1194 = vmatprep.subr.mxu0 0.0
        %1195 = vmatpush1.msra.mxu0 0.0
        %1196 = vmatprep.subr.mxu0 0.0
        %1197 = vmatpush1.msra.mxu0 0.0
        %1198 = vmatprep.subr.mxu0 0.0
        %1199 = vmatpush1.msra.mxu0 0.0
        %1200 = vmatprep.subr.mxu0 0.0
        %1201 = vmatpush1.msra.mxu0 0.0
        %1202 = vmatprep.subr.mxu0 0.0
        %1203 = vmatpush1.msra.mxu0 0.0
        %1204 = vmatprep.subr.mxu0 0.0
        %1205 = vmatpush1.msra.mxu0 0.0
        %1206 = vmatprep.subr.mxu0 0.0
        %1207 = vmatpush1.msra.mxu0 0.0
        %1208 = vmatprep.subr.mxu0 0.0
        %1209 = vmatpush1.msra.mxu0 0.0
        %1210 = vmatprep.subr.mxu0 0.0
        %1211 = vmatpush1.msra.mxu0 0.0
        %1212 = vmatprep.subr.mxu0 0.0
        %1213 = vmatpush1.msra.mxu0 0.0
        %1214 = vmatprep.subr.mxu0 0.0
        %1215 = vmatpush1.msra.mxu0 0.0
        %1216 = vmatprep.subr.mxu0 0.0
        %1217 = vmatpush1.msra.mxu0 0.0
        %1218 = vmatprep.subr.mxu0 0.0
        %1219 = vmatpush1.msra.mxu0 0.0
        %1220 = vmatprep.subr.mxu0 0.0
        %1221 = vmatpush1.msra.mxu0 0.0
        %1222 = vmatprep.subr.mxu0 0.0
        %1223 = vmatpush1.msra.mxu0 0.0
        %1224 = vmatprep.subr.mxu0 0.0
        %1225 = vmatpush1.msra.mxu0 0.0
        %1226 = vmatprep.subr.mxu0 0.0
        %1227 = vmatpush1.msra.mxu0 0.0
        %1228 = vmatprep.subr.mxu0 0.0
        %1229 = vmatpush1.msra.mxu0 0.0
        %1230 = vmatprep.subr.mxu0 0.0
        %1231 = vmatpush1.msra.mxu0 0.0
        %1232 = vmatprep.subr.mxu0 0.0
        %1233 = vmatpush1.msra.mxu0 0.0
        %1234 = vmatprep.subr.mxu0 0.0
        %1235 = vmatpush1.msra.mxu0 0.0
        %1236 = vmatprep.subr.mxu0 0.0
        %1237 = vmatpush1.msra.mxu0 0.0
        %1238 = vmatprep.subr.mxu0 0.0
        %1239 = vmatpush1.msra.mxu0 0.0
        %1240 = vmatprep.mubr.f32.mxu0 0.0
        %1241 = vmatmul.mubr.f32.gmra.mrb[0].mxu0 %v1174
        %v1242 = vpop.f32.mrb[0].mxu0
        %v1243 = vadd.f32 %v321, %v1242
        %v1244 = vpop.f32.mrb[0].mxu0
        %1245 = vdwg.mxu0
        %v1246 = vadd.f32 %v1170, %v1243
        %v1247 = vxor.u32 %v1246, 2147483648
        %v1248 = vmul.f32 %v1247, 1.442695
        %v1249 = vpow.pop %v1248
        %v1250 = vadd.f32 %v1249, 1.0
        %v1251 = vrcp.pop %v1250
        %v1252 = vmul.f32 1.0, %v1251
        %1254 = vrot.lane.b32.xlu0 %v1243, 64
        %v1255 = vpop.permute.xlu0 %1254
        %v1257 = vmul.f32 %v1252, %v1255
        %1259 = vrot.lane.b32.xlu0 %v1257, 64
        %v1260 = vpop.permute.xlu0 %1259
        %v1262 = vadd.f32 %v1170, %v1260
        %v1263 = vtanh.pop %v1262
        %v1264 = vsub.f32 1.0, %v1252
        %1266 = vrot.lane.b32.xlu0 %v1263, 96
        %v1267 = vpop.permute.xlu0 %1266
        %v1269 = vmul.f32 %v1264, %v1267
        %v1270 = vmul.f32 %v1252, %v1158
        %v1271 = vadd.f32 %v1269, %v1270
        %s1272 = scalar_lea.vmem %s1, %s1168
        %v1273 = vld [vmem:[%s1272] sm:$0x3]
        %vm1274 = vcmp.gt.f32.partialorder %v1273, 0.5
        %v1275 = vsel %vm1274, 1, 0
        %1276 = vset.pattern.permute.xlu0 0
        %1277 = vperm.xlu0 %1276, %v1275
        %v1278 = vpop.permute.xlu0 %1277
        %vm1279 = vcmp.eq.s32.totalorder %v1278, 1
        %v1280 = vsel %vm1279, %v1271, %v1158
        %v1281 = vsel %vm1279, %v1271, 0.0
        %1283 = vrot.lane.b32.xlu0 %v1281, 96
        %v1284 = vpop.permute.xlu0 %1283
        %s1286 = scalar_lea.vmem %s297, %s1168 [#allocation7]
        %1287 = vst.msk [vmem:[%s1286] sm:$0x3] %vm437, %v1284
        %1289 = vrot.lane.b32.xlu0 %v1280, 96
        %v1290 = vpop.permute.xlu0 %1289
        %1292 = vst.msk [vmem:[%s304] sm:$0x3] %vm437, %v1290
        %s1293 = sand.u32 %s136, 1
        %s1294 = scalar_lea.sflag [#allocation4], %s1293
        %s1295 = sand.u32 %s136, 1
        %s1296 = smul.addr %s1295, 16
        %s1297 = scalar_lea.vmem [#allocation7], %s1296
        %s1298 = sand.u32 %s162, 1
        %s1299 = scalar_lea.sflag [#allocation9], %s1298
        %s1300 = sand.u32 %s162, 1
        %s1301 = smul.addr %s1300, 2
        %s1302 = scalar_lea.vmem [#allocation8], %s1301
        // Predicated region
        $region45: #{tpu_custom_call.1} parent=35 // pred_check
          %p1303 = pneg %p146
        $region46: #{tpu_custom_call.1} parent=35 // pred_check_branch
          %1305 = sbr.rel (%p1303) target = $region48
        $region47: #{tpu_custom_call.1} parent=35 // pred_region
          %s1307 = ssub.s32 256, 256
          %1308 = vsyncadd %s1294, %s1307
          %s1309 = smul.addr %s29, 8
          %s1310 = smul.addr %s1309, 32
          %s1311 = scalar_lea.hbm %s4, %s1310
          %s1312 = sshll.u32 %s1297, 4
          %s1313 = int_to_ptr.vmem [resolvable:$true] %s1312
          %1318 = dma.vmem_to_hbm [thread:$0]  %s1313, 256, %s1311, %s1294, 32, 32, 2
        $region48: #{tpu_custom_call.1} parent=35 // pred_fallthru
          _
        // Predicated region
        $region49: #{tpu_custom_call.1} parent=35 // pred_check
          %p1319 = pneg %p172
        $region50: #{tpu_custom_call.1} parent=35 // pred_check_branch
          %1321 = sbr.rel (%p1319) target = $region52
        $region51: #{tpu_custom_call.1} parent=35 // pred_region
          %s1323 = ssub.s32 32, 32
          %1324 = vsyncadd %s1299, %s1323
          %s1325 = smul.addr %s29, 32
          %s1326 = scalar_lea.hbm %s5, %s1325
          %s1328 = sshll.u32 %s1302, 4
          %s1329 = int_to_ptr.vmem [resolvable:$true] %s1328
          %1331 = dma.vmem_to_hbm [thread:$0]  %s1329, 32, %s1326, %s1299
        $region52: #{tpu_custom_call.1} parent=35 // pred_fallthru
          _
      $region36: #{tpu_custom_call.1} parent=5 // pred_fallthru
        _
      %p1332 = scmp.le.s32.totalorder 2, %s24
      // Predicated region
      $region53: #{tpu_custom_call.1} parent=5 // pred_check
        %p1333 = pneg %p1332
      $region54: #{tpu_custom_call.1} parent=5 // pred_check_branch
        %1335 = sbr.rel (%p1333) target = $region56
      $region55: #{tpu_custom_call.1} parent=5 // pred_region
        %s1336 = ssub.s32 %s24, 2
        // Predicated region
        $region57: #{tpu_custom_call.1} parent=55 // pred_check
          %p1337 = pneg %p152
        $region58: #{tpu_custom_call.1} parent=55 // pred_check_branch
          %1339 = sbr.rel (%p1337) target = $region60
        $region59: #{tpu_custom_call.1} parent=55 // pred_region
          %s1340 = sand.u32 %s137, 1
          %s1341 = scalar_lea.sflag [#allocation4], %s1340
          %s1342 = sand.u32 %s137, 1
          %s1343 = smul.addr %s1342, 16
          %s1344 = scalar_lea.vmem [#allocation7], %s1343
          %1345 = dma.done %s1341, 256
        $region60: #{tpu_custom_call.1} parent=55 // pred_fallthru
          _
        // Predicated region
        $region61: #{tpu_custom_call.1} parent=55 // pred_check
          %p1346 = pneg %p178
        $region62: #{tpu_custom_call.1} parent=55 // pred_check_branch
          %1348 = sbr.rel (%p1346) target = $region64
        $region63: #{tpu_custom_call.1} parent=55 // pred_region
          %s1349 = sand.u32 %s163, 1
          %s1350 = scalar_lea.sflag [#allocation9], %s1349
          %s1351 = sand.u32 %s163, 1
          %s1352 = smul.addr %s1351, 2
          %s1353 = scalar_lea.vmem [#allocation8], %s1352
          %1354 = dma.done %s1350, 32
        $region64: #{tpu_custom_call.1} parent=55 // pred_fallthru
          _
      $region56: #{tpu_custom_call.1} parent=5 // pred_fallthru
        _
    $region6: #{tpu_custom_call.1} parent=1 // loop_footer
      %s28 = sadd.s32 1, %s24
    $region7: #{tpu_custom_call.1} parent=1 // loop_footer_branch
      %23 = sbr.rel target = $region3
    $region8: #{tpu_custom_call.1} parent=1 // loop_exit
      _
    %1355 = vsyncpa [#allocation3], 1
    %s1356 = scalar_lea.sflag [#allocation3], 1
    %1357 = vsyncpa %s1356, 1
    %1358 = vsyncpa [#allocation6], 1
    %s1359 = scalar_lea.sflag [#allocation6], 1
    %1360 = vsyncpa %s1359, 1
    %1361 = vsyncpa [#allocation4], 1
    %s1362 = scalar_lea.sflag [#allocation4], 1
    %1363 = vsyncpa %s1362, 1
    %1364 = vsyncpa [#allocation9], 1
    %s1365 = scalar_lea.sflag [#allocation9], 1
    %1366 = vsyncpa %s1365, 1

</llo_original>
